<compile_context>
chip_gen: v7x
topology: tpu7x:2x2x1
jax: 0.10.0
libtpu: 0.0.40
codegen_flags: <defaults>
</compile_context>

<pallas_src>
import math
from functools import partial

import jax
import jax.numpy as jnp
from jax import lax
from jax.experimental import pallas as pl
from jax.experimental.pallas import tpu as pltpu


# 64 MiB = v7x physical VMEM per TensorCore; a safe explicit cap on all gens
# (v5e/v6e have 128 MiB physical, so this only raises their default budget).
_VMEM_LIMIT = 64 * 1024 * 1024


# ----------------------------- tiling helpers ------------------------------


def _pick_tile(dim: int, target: int, *, lane: bool) -> int:
    """Largest legal tile <= target that divides dim.

    lane=True  -> tile must be a multiple of 128 (or the full dim).
    lane=False -> tile must be a multiple of 8   (or the full dim).
    Raises instead of silently producing an unbounded VMEM tile for huge,
    awkwardly-shaped dims (important on v7x's smaller VMEM).
    """
    if dim <= target:
        return dim
    t = (target // 128) * 128
    while t >= 128:
        if dim % t == 0:
            return t
        t -= 128
    if not lane:
        t = (target // 8) * 8
        while t >= 8:
            if dim % t == 0:
                return t
            t -= 8
    if dim <= 4096:
        return dim  # full dim is always layout-legal; cap keeps VMEM bounded
    raise ValueError(f"No legal tile for dim={dim} (target={target}, lane={lane}).")


# ----------------------------- tiled matmul ---------------------------------


def _matmul_kernel(x_ref, w_ref, o_ref, acc_ref):
    @pl.when(pl.program_id(2) == 0)
    def _init():
        acc_ref[...] = jnp.zeros_like(acc_ref)

    acc_ref[...] += jnp.dot(
        x_ref[...], w_ref[...], preferred_element_type=jnp.float32
    )

    @pl.when(pl.program_id(2) == pl.num_programs(2) - 1)
    def _store():
        o_ref[...] = acc_ref[...].astype(o_ref.dtype)


def pallas_matmul(x2d: jax.Array, w: jax.Array, out_dtype=None) -> jax.Array:
    """x2d: [M, K] @ w: [K, N] -> [M, N]; f32 accumulation, bf16-friendly."""
    M, K = x2d.shape
    K2, N = w.shape
    assert K == K2
    out_dtype = out_dtype if out_dtype is not None else x2d.dtype
    tm = _pick_tile(M, 512, lane=False)
    tn = _pick_tile(N, 512, lane=True)
    tk_target = 1024 if x2d.dtype == jnp.bfloat16 else 512
    tk = _pick_tile(K, tk_target, lane=True)
    grid = (M // tm, N // tn, K // tk)
    return pl.pallas_call(
        _matmul_kernel,
        out_shape=jax.ShapeDtypeStruct((M, N), out_dtype),
        grid=grid,
        in_specs=[
            pl.BlockSpec((tm, tk), lambda i, j, k: (i, k)),
            pl.BlockSpec((tk, tn), lambda i, j, k: (k, j)),
        ],
        out_specs=pl.BlockSpec((tm, tn), lambda i, j, k: (i, j)),
        scratch_shapes=[pltpu.VMEM((tm, tn), jnp.float32)],
        compiler_params=pltpu.CompilerParams(
            dimension_semantics=("parallel", "parallel", "arbitrary"),
            vmem_limit_bytes=_VMEM_LIMIT,
        ),
    )(x2d, w)


# ------------------------ flash causal attention -----------------------------


def _flash_attn_kernel(q_ref, k_ref, v_ref, o_ref, m_sc, l_sc, acc_sc, *, tq, tk):
    # q_ref: (tq, D) q tile.  k_ref / v_ref: (T, D) — the FULL K/V for this
    # head, VMEM-resident (copied once per head, Pallas elides re-DMA across
    # q tiles because the kv block index only depends on the bh grid axis).
    qi = pl.program_id(1)
    q_start = qi * tq

    # New q tile -> reset the online-softmax state.
    m_sc[...] = jnp.full_like(m_sc, -jnp.inf)
    l_sc[...] = jnp.zeros_like(l_sc)
    acc_sc[...] = jnp.zeros_like(acc_sc)

    # 1/sqrt(D) is already folded into q (via its RoPE coefficients).
    q = q_ref[...]

    def _update(k_blk, v_blk, s_mask=None):
        # dot_general contracts D of both operands — no k.T transpose emitted;
        # native-dtype MXU inputs, f32 accumulation.
        s = lax.dot_general(
            q, k_blk, (((1,), (1,)), ((), ())),
            preferred_element_type=jnp.float32,
        )
        if s_mask is not None:
            s = jnp.where(s_mask, s, -jnp.inf)
        m_prev = m_sc[...]
        m_new = jnp.maximum(m_prev, jnp.max(s, axis=-1, keepdims=True))
        alpha = jnp.exp(m_prev - m_new)
        p = jnp.exp(s - m_new)
        l_sc[...] = alpha * l_sc[...] + jnp.sum(p, axis=-1, keepdims=True)
        acc_sc[...] = alpha * acc_sc[...] + lax.dot_general(
            p.astype(v_blk.dtype), v_blk, (((1,), (0,)), ((), ())),
            preferred_element_type=jnp.float32,
        )
        m_sc[...] = m_new

    # Interior (fully-unmasked) kv tiles: ki in [0, qi).  With tq == tk these
    # are exactly the tiles strictly below the diagonal block, so the causal
    # upper triangle costs neither DMA nor compute.
    @pl.loop(0, qi)
    def _interior(ki):
        k_start = pl.multiple_of(ki * tk, tk)
        _update(k_ref[pl.ds(k_start, tk), :], v_ref[pl.ds(k_start, tk), :])

    # Diagonal tile (k_start == q_start because tq == tk): local causal mask.
    d_start = pl.multiple_of(q_start, tk)
    row = lax.broadcasted_iota(jnp.int32, (tq, tk), 0)
    col = lax.broadcasted_iota(jnp.int32, (tq, tk), 1)
    _update(k_ref[pl.ds(d_start, tk), :], v_ref[pl.ds(d_start, tk), :],
            s_mask=row >= col)

    # Exact reciprocal (output may be f32); off the critical slot either way.
    inv_l = pl.reciprocal(l_sc[...], approx=False)
    o_ref[...] = (acc_sc[...] * inv_l).astype(o_ref.dtype)


def pallas_causal_attention(q: jax.Array, k: jax.Array, v: jax.Array) -> jax.Array:
    """q, k, v: [B*H, T, D] -> [B*H, T, D]. Causal flash attention.

    K/V are resident per head (one HBM read per head instead of one per q
    tile), and the in-kernel kv loop stops at the causal limit.
    Note: for long T the resident K/V VMEM footprint is ~2 * T * D * bytes
    (double-buffered); raise _VMEM_LIMIT / shrink if T * D grows very large.
    """
    BH, T, D = q.shape
    t = _pick_tile(T, 512, lane=False)
    tq = tk = t  # diagonal-block handling in the kernel assumes tq == tk
    assert T % tq == 0
    grid = (BH, T // tq)

    q_spec = pl.BlockSpec((None, tq, D), lambda bh, qi: (bh, qi, 0))
    # Full-length K/V block; index_map depends only on bh -> DMA'd once per
    # head and kept VMEM-resident across all q tiles (copy elided otherwise).
    kv_spec = pl.BlockSpec((None, T, D), lambda bh, qi: (bh, 0, 0))
    o_spec = pl.BlockSpec((None, tq, D), lambda bh, qi: (bh, qi, 0))

    return pl.pallas_call(
        partial(_flash_attn_kernel, tq=tq, tk=tk),
        out_shape=jax.ShapeDtypeStruct((BH, T, D), q.dtype),
        grid=grid,
        in_specs=[q_spec, kv_spec, kv_spec],
        out_specs=o_spec,
        scratch_shapes=[
            pltpu.VMEM((tq, 1), jnp.float32),   # running max m
            pltpu.VMEM((tq, 1), jnp.float32),   # running denom l
            pltpu.VMEM((tq, D), jnp.float32),   # output accumulator
        ],
        compiler_params=pltpu.CompilerParams(
            # bh axis is "parallel": on v7x both TensorCores are busy as long
            # as BH >= 2 (true for any multi-head config).
            dimension_semantics=("parallel", "arbitrary"),
            vmem_limit_bytes=_VMEM_LIMIT,
        ),
    )(q, k, v)


# ------------------------------- JAX glue ----------------------------------


def build_rope_cache(seq_len: int, n_elem: int, base: int = 10000):
    """Matches torch build_rope_cache: (cos, sin) of shape [seq_len, n_elem//2]."""
    theta = 1.0 / (base ** (jnp.arange(0, n_elem, 2, dtype=jnp.float32) / n_elem))
    seq_idx = jnp.arange(seq_len, dtype=jnp.float32)
    idx_theta = jnp.outer(seq_idx, theta)
    return jnp.cos(idx_theta), jnp.sin(idx_theta)


def apply_rope(x: jax.Array, cos: jax.Array, sin: jax.Array) -> jax.Array:
    """x: [..., T, D]; cos/sin: [T, D//2]. Complex multiply on interleaved pairs."""
    *lead, T, D = x.shape
    xr = x.astype(jnp.float32).reshape(*lead, T, D // 2, 2)
    a, b = xr[..., 0], xr[..., 1]
    bshape = (1,) * len(lead) + (T, D // 2)
    c = cos.reshape(bshape)
    s = sin.reshape(bshape)
    out = jnp.stack([a * c - b * s, a * s + b * c], axis=-1)
    return out.reshape(*lead, T, D).astype(x.dtype)


def causal_self_attention(x, w_attn_t, w_proj_t, *, n_head: int, block_size: int):
    """x: [B, T, C]; w_attn_t: [C, 3C]; w_proj_t: [C, C] (pre-transposed weights)."""
    B, T, C = x.shape
    head_size = C // n_head

    # qkv projection: bf16 MXU inputs, f32 accumulation, output back in x.dtype.
    # (In production, store the weights pre-transposed AND pre-cast to bf16.)
    qkv = pallas_matmul(
        x.astype(jnp.bfloat16).reshape(B * T, C),
        w_attn_t.astype(jnp.bfloat16),
        out_dtype=x.dtype,
    ).reshape(B, T, 3 * C)
    q, k, v = jnp.split(qkv, 3, axis=2)

    # [B, T, C] -> [B*H, T, head_size]
    def split_heads(t):
        return (t.reshape(B, T, n_head, head_size)
                 .transpose(0, 2, 1, 3)
                 .reshape(B * n_head, T, head_size))

    q, k, v = split_heads(q), split_heads(k), split_heads(v)

    cos, sin = build_rope_cache(block_size, head_size)
    cos, sin = cos[:T], sin[:T]
    # Fold the 1/sqrt(D) attention scale into q's rotation coefficients:
    # the in-kernel per-step score multiply disappears for free.
    scale = 1.0 / math.sqrt(head_size)
    q = apply_rope(q, cos * scale, sin * scale)
    k = apply_rope(k, cos, sin)

    # causal flash attention (Pallas kernel, resident K/V per head)
    y = pallas_causal_attention(q, k, v)          # [B*H, T, head_size]

    # merge heads, output projection (tiled Pallas matmul, bf16 inputs)
    y = (y.reshape(B, n_head, T, head_size)
          .transpose(0, 2, 1, 3)
          .reshape(B * T, C))
    y = pallas_matmul(
        y.astype(jnp.bfloat16), w_proj_t.astype(jnp.bfloat16), out_dtype=x.dtype
    ).reshape(B, T, C)
    return y


# ------------------------------ reference ----------------------------------


def reference_forward(x, w_attn, w_proj, *, n_head: int, block_size: int):
    B, T, C = x.shape
    hs = C // n_head
    qkv = x @ w_attn.T
    q, k, v = jnp.split(qkv, 3, axis=2)
    q = q.reshape(B, T, n_head, hs).transpose(0, 2, 1, 3)
    k = k.reshape(B, T, n_head, hs).transpose(0, 2, 1, 3)
    v = v.reshape(B, T, n_head, hs).transpose(0, 2, 1, 3)
    cos, sin = build_rope_cache(block_size, hs)
    q = apply_rope(q, cos[:T], sin[:T])
    k = apply_rope(k, cos[:T], sin[:T])
    s = jnp.einsum("bhqd,bhkd->bhqk", q, k) / math.sqrt(hs)
    mask = jnp.tril(jnp.ones((T, T), dtype=bool))
    s = jnp.where(mask, s, -jnp.inf)
    p = jax.nn.softmax(s, axis=-1)
    y = jnp.einsum("bhqk,bhkd->bhqd", p, v)
    y = y.transpose(0, 2, 1, 3).reshape(B, T, C)
    return y @ w_proj.T


# --------------------------------- main -------------------------------------

if __name__ == "__main__":
    # Small config consistent with the module: n_embd % n_head == 0.
    B, T = 2, 8
    n_embd, n_head, block_size = 32, 4, 16

    key = jax.random.PRNGKey(0)
    kx, ka, kp = jax.random.split(key, 3)
    x = jax.random.normal(kx, (B, T, n_embd), dtype=jnp.float32)
    # nn.Linear weights are (out_features, in_features), bias=False.
    w_attn = jax.random.normal(ka, (3 * n_embd, n_embd), dtype=jnp.float32) * 0.02
    w_proj = jax.random.normal(kp, (n_embd, n_embd), dtype=jnp.float32) * 0.02

    # Pre-transpose weights ONCE, outside the jitted hot path.
    w_attn_t = jnp.asarray(w_attn.T)
    w_proj_t = jnp.asarray(w_proj.T)

    fwd = jax.jit(
        partial(causal_self_attention, n_head=n_head, block_size=block_size)
    )
    y = fwd(x, w_attn_t, w_proj_t)
    jax.block_until_ready(y)

    y_ref = reference_forward(x, w_attn, w_proj, n_head=n_head, block_size=block_size)
    assert y.shape == (B, T, n_embd)
    # bf16 MXU inputs on the projections -> small tolerance vs f32 reference.
    max_err = float(jnp.max(jnp.abs(y - y_ref)))
    assert jnp.allclose(y, y_ref, atol=1e-2, rtol=1e-2), max_err

    print("KERNEL_OK")
</pallas_src>

<mosaic_0001>
module attributes {stable_mosaic.version = 11 : i64} {
  func.func @_matmul_kernel(%arg0: i32, %arg1: i32, %arg2: i32, %arg3: memref<16x32xbf16, #tpu.memory_space<vmem>>, %arg4: memref<32x96xbf16, #tpu.memory_space<vmem>>, %arg5: memref<16x96xf32, #tpu.memory_space<vmem>>, %arg6: memref<16x96xf32, #tpu.memory_space<vmem>>) attributes {dimension_semantics = [#tpu.dimension_semantics<parallel>, #tpu.dimension_semantics<parallel>, #tpu.dimension_semantics<arbitrary>], iteration_bounds = array<i64: 1, 1, 1>, scalar_prefetch = 0 : i64, scratch_operands = 1 : i64, tpu.core_type = #tpu.core_type<tc>, window_params = [{transform_indices = @transform_0, window_bounds = array<i64: 16, 32>}, {transform_indices = @transform_1, window_bounds = array<i64: 32, 96>}, {transform_indices = @transform_2, window_bounds = array<i64: 16, 96>}]} {
    %c0_i32 = arith.constant 0 : i32
    %0 = arith.cmpi eq, %arg2, %c0_i32 : i32
    %1 = arith.extui %0 : i1 to i32
    %c0_i32_0 = arith.constant 0 : i32
    %2 = arith.cmpi ne, %1, %c0_i32_0 : i32
    scf.if %2 {
      %cst_10 = arith.constant 0.000000e+00 : f32
      %12 = vector.broadcast %cst_10 : f32 to vector<16x96xf32>
      %c0_11 = arith.constant 0 : index
      %c0_12 = arith.constant 0 : index
      %13 = vector.load %arg6[%c0_11, %c0_12] : memref<16x96xf32, #tpu.memory_space<vmem>>, vector<16x96xf32>
      tpu.vector_store %arg6[%c0_11, %c0_12], %12 {strides = array<i32>} : memref<16x96xf32, #tpu.memory_space<vmem>>, vector<16x96xf32>,
    } else {
    }
    %c0 = arith.constant 0 : index
    %c0_1 = arith.constant 0 : index
    %3 = vector.load %arg6[%c0, %c0_1] : memref<16x96xf32, #tpu.memory_space<vmem>>, vector<16x96xf32>
    %c0_2 = arith.constant 0 : index
    %c0_3 = arith.constant 0 : index
    %4 = vector.load %arg3[%c0_2, %c0_3] : memref<16x32xbf16, #tpu.memory_space<vmem>>, vector<16x32xbf16>
    %c0_4 = arith.constant 0 : index
    %c0_5 = arith.constant 0 : index
    %5 = vector.load %arg4[%c0_4, %c0_5] : memref<32x96xbf16, #tpu.memory_space<vmem>>, vector<32x96xbf16>
    %cst = arith.constant dense<0.000000e+00> : vector<16x96xf32>
    %6 = tpu.matmul %4, %5, %cst {dimension_numbers = #tpu.dot_dimension_numbers<[1], [0], [0], [1], [0, 0, 1, 1], [], []>} : vector<16x32xbf16>, vector<32x96xbf16>, vector<16x96xf32> -> vector<16x96xf32>
    %7 = arith.addf %3, %6 : vector<16x96xf32>
    %c0_6 = arith.constant 0 : index
    %c0_7 = arith.constant 0 : index
    %8 = vector.load %arg6[%c0_6, %c0_7] : memref<16x96xf32, #tpu.memory_space<vmem>>, vector<16x96xf32>
    tpu.vector_store %arg6[%c0_6, %c0_7], %7 {strides = array<i32>} : memref<16x96xf32, #tpu.memory_space<vmem>>, vector<16x96xf32>,
    %c0_i32_8 = arith.constant 0 : i32
    %9 = arith.cmpi eq, %arg2, %c0_i32_8 : i32
    %10 = arith.extui %9 : i1 to i32
    %c0_i32_9 = arith.constant 0 : i32
    %11 = arith.cmpi ne, %10, %c0_i32_9 : i32
    scf.if %11 {
      %c0_10 = arith.constant 0 : index
      %c0_11 = arith.constant 0 : index
      %12 = vector.load %arg6[%c0_10, %c0_11] : memref<16x96xf32, #tpu.memory_space<vmem>>, vector<16x96xf32>
      %c0_12 = arith.constant 0 : index
      %c0_13 = arith.constant 0 : index
      %13 = vector.load %arg5[%c0_12, %c0_13] : memref<16x96xf32, #tpu.memory_space<vmem>>, vector<16x96xf32>
      tpu.vector_store %arg5[%c0_12, %c0_13], %12 {strides = array<i32>} : memref<16x96xf32, #tpu.memory_space<vmem>>, vector<16x96xf32>,
    } else {
    }
    return
  }
  func.func @transform_0(%arg0: i32, %arg1: i32, %arg2: i32) -> (i32, i32) {
    %c0_i32 = arith.constant 0 : i32
    return %arg0, %arg2 : i32, i32
  }
  func.func @transform_1(%arg0: i32, %arg1: i32, %arg2: i32) -> (i32, i32) {
    %c0_i32 = arith.constant 0 : i32
    return %arg2, %arg1 : i32, i32
  }
  func.func @transform_2(%arg0: i32, %arg1: i32, %arg2: i32) -> (i32, i32) {
    %c0_i32 = arith.constant 0 : i32
    return %arg0, %arg1 : i32, i32
  }
}

module attributes {stable_mosaic.version = 11 : i64} {
  func.func @_flash_attn_kernel(%arg0: i32, %arg1: i32, %arg2: memref<1x8x8xf32, #tpu.memory_space<vmem>>, %arg3: memref<1x8x8xf32, #tpu.memory_space<vmem>>, %arg4: memref<1x8x8xf32, #tpu.memory_space<vmem>>, %arg5: memref<1x8x8xf32, #tpu.memory_space<vmem>>, %arg6: memref<8x1xf32, #tpu.memory_space<vmem>>, %arg7: memref<8x1xf32, #tpu.memory_space<vmem>>, %arg8: memref<8x8xf32, #tpu.memory_space<vmem>>) attributes {dimension_semantics = [#tpu.dimension_semantics<parallel>, #tpu.dimension_semantics<arbitrary>], iteration_bounds = array<i64: 8, 1>, scalar_prefetch = 0 : i64, scratch_operands = 3 : i64, tpu.core_type = #tpu.core_type<tc>, window_params = [{transform_indices = @transform_0, window_bounds = array<i64: 1, 8, 8>}, {transform_indices = @transform_1, window_bounds = array<i64: 1, 8, 8>}, {transform_indices = @transform_2, window_bounds = array<i64: 1, 8, 8>}, {transform_indices = @transform_3, window_bounds = array<i64: 1, 8, 8>}]} {
    %c8_i32 = arith.constant 8 : i32
    %0 = arith.muli %arg1, %c8_i32 : i32
    %cst = arith.constant 0xFF800000 : f32
    %1 = vector.broadcast %cst : f32 to vector<8x1xf32>
    %c0 = arith.constant 0 : index
    %c0_0 = arith.constant 0 : index
    %2 = vector.load %arg6[%c0, %c0_0] : memref<8x1xf32, #tpu.memory_space<vmem>>, vector<8x1xf32>
    tpu.vector_store %arg6[%c0, %c0_0], %1 {strides = array<i32>} : memref<8x1xf32, #tpu.memory_space<vmem>>, vector<8x1xf32>,
    %cst_1 = arith.constant 0.000000e+00 : f32
    %3 = vector.broadcast %cst_1 : f32 to vector<8x1xf32>
    %c0_2 = arith.constant 0 : index
    %c0_3 = arith.constant 0 : index
    %4 = vector.load %arg7[%c0_2, %c0_3] : memref<8x1xf32, #tpu.memory_space<vmem>>, vector<8x1xf32>
    tpu.vector_store %arg7[%c0_2, %c0_3], %3 {strides = array<i32>} : memref<8x1xf32, #tpu.memory_space<vmem>>, vector<8x1xf32>,
    %cst_4 = arith.constant 0.000000e+00 : f32
    %5 = vector.broadcast %cst_4 : f32 to vector<8x8xf32>
    %c0_5 = arith.constant 0 : index
    %c0_6 = arith.constant 0 : index
    %6 = vector.load %arg8[%c0_5, %c0_6] : memref<8x8xf32, #tpu.memory_space<vmem>>, vector<8x8xf32>
    tpu.vector_store %arg8[%c0_5, %c0_6], %5 {strides = array<i32>} : memref<8x8xf32, #tpu.memory_space<vmem>>, vector<8x8xf32>,
    %c0_7 = arith.constant 0 : index
    %c0_8 = arith.constant 0 : index
    %c0_9 = arith.constant 0 : index
    %7 = vector.load %arg2[%c0_7, %c0_8, %c0_9] : memref<1x8x8xf32, #tpu.memory_space<vmem>>, vector<1x8x8xf32>
    %8 = vector.shape_cast %7 : vector<1x8x8xf32> to vector<8x8xf32>
    %c0_i32 = arith.constant 0 : i32
    %9 = arith.subi %arg1, %c0_i32 : i32
    %c1_i32 = arith.constant 1 : i32
    %c1_i32_10 = arith.constant 1 : i32
    %10 = arith.subi %c1_i32, %c1_i32_10 : i32
    %11 = arith.addi %9, %10 : i32
    %c1_i32_11 = arith.constant 1 : i32
    %12 = arith.divsi %11, %c1_i32_11 : i32
    %c1_i32_12 = arith.constant 1 : i32
    %c0_i32_13 = arith.constant 0 : i32
    %c0_i32_14 = arith.constant 0 : i32
    %13 = arith.subi %12, %c0_i32_14 : i32
    %14 = arith.addi %c0_i32_14, %13 : i32
    %c1_i32_15 = arith.constant 1 : i32
    scf.for %arg9 = %c0_i32_14 to %14 step %c1_i32_15  : i32 {
      %58 = arith.muli %arg9, %c1_i32_12 : i32
      %59 = arith.addi %c0_i32_13, %58 : i32
      %c8_i32_44 = arith.constant 8 : i32
      %60 = arith.muli %59, %c8_i32_44 : i32
      %61 = tpu.assume_multiple %60, 8 : i32
      %c0_45 = arith.constant 0 : index
      %62 = arith.index_cast %61 : i32 to index
      %c0_46 = arith.constant 0 : index
      %63 = vector.load %arg3[%c0_45, %62, %c0_46] : memref<1x8x8xf32, #tpu.memory_space<vmem>>, vector<1x8x8xf32>
      %64 = vector.shape_cast %63 : vector<1x8x8xf32> to vector<8x8xf32>
      %c0_47 = arith.constant 0 : index
      %65 = arith.index_cast %61 : i32 to index
      %c0_48 = arith.constant 0 : index
      %66 = vector.load %arg4[%c0_47, %65, %c0_48] : memref<1x8x8xf32, #tpu.memory_space<vmem>>, vector<1x8x8xf32>
      %67 = vector.shape_cast %66 : vector<1x8x8xf32> to vector<8x8xf32>
      %cst_49 = arith.constant dense<0.000000e+00> : vector<8x8xf32>
      %68 = tpu.matmul %8, %64, %cst_49 {dimension_numbers = #tpu.dot_dimension_numbers<[1], [1], [0], [0], [0, 0, 1, 0], [], []>} : vector<8x8xf32>, vector<8x8xf32>, vector<8x8xf32> -> vector<8x8xf32>
      %c0_50 = arith.constant 0 : index
      %c0_51 = arith.constant 0 : index
      %69 = vector.load %arg6[%c0_50, %c0_51] : memref<8x1xf32, #tpu.memory_space<vmem>>, vector<8x1xf32>
      %cst_52 = arith.constant dense<0xFF800000> : vector<8xf32>
      %70 = vector.multi_reduction <maximumf>, %68, %cst_52 [1] : vector<8x8xf32> to vector<8xf32>
      %71 = vector.shape_cast %70 : vector<8xf32> to vector<8x1xf32>
      %72 = arith.maximumf %69, %71 : vector<8x1xf32>
      %73 = arith.subf %69, %72 : vector<8x1xf32>
      %74 = math.exp %73 : vector<8x1xf32>
      %75 = vector.broadcast %72 : vector<8x1xf32> to vector<8x8xf32>
      %76 = arith.subf %68, %75 : vector<8x8xf32>
      %77 = math.exp %76 : vector<8x8xf32>
      %c0_53 = arith.constant 0 : index
      %c0_54 = arith.constant 0 : index
      %78 = vector.load %arg7[%c0_53, %c0_54] : memref<8x1xf32, #tpu.memory_space<vmem>>, vector<8x1xf32>
      %79 = arith.mulf %74, %78 : vector<8x1xf32>
      %cst_55 = arith.constant dense<0.000000e+00> : vector<8xf32>
      %80 = vector.multi_reduction <add>, %77, %cst_55 [1] : vector<8x8xf32> to vector<8xf32>
      %81 = vector.shape_cast %80 : vector<8xf32> to vector<8x1xf32>
      %82 = arith.addf %79, %81 : vector<8x1xf32>
      %c0_56 = arith.constant 0 : index
      %c0_57 = arith.constant 0 : index
      %83 = vector.load %arg7[%c0_56, %c0_57] : memref<8x1xf32, #tpu.memory_space<vmem>>, vector<8x1xf32>
      tpu.vector_store %arg7[%c0_56, %c0_57], %82 {strides = array<i32>} : memref<8x1xf32, #tpu.memory_space<vmem>>, vector<8x1xf32>,
      %c0_58 = arith.constant 0 : index
      %c0_59 = arith.constant 0 : index
      %84 = vector.load %arg8[%c0_58, %c0_59] : memref<8x8xf32, #tpu.memory_space<vmem>>, vector<8x8xf32>
      %85 = vector.broadcast %74 : vector<8x1xf32> to vector<8x8xf32>
      %86 = arith.mulf %85, %84 : vector<8x8xf32>
      %cst_60 = arith.constant dense<0.000000e+00> : vector<8x8xf32>
      %87 = tpu.matmul %77, %67, %cst_60 {dimension_numbers = #tpu.dot_dimension_numbers<[1], [0], [0], [1], [0, 0, 1, 1], [], []>} : vector<8x8xf32>, vector<8x8xf32>, vector<8x8xf32> -> vector<8x8xf32>
      %88 = arith.addf %86, %87 : vector<8x8xf32>
      %c0_61 = arith.constant 0 : index
      %c0_62 = arith.constant 0 : index
      %89 = vector.load %arg8[%c0_61, %c0_62] : memref<8x8xf32, #tpu.memory_space<vmem>>, vector<8x8xf32>
      tpu.vector_store %arg8[%c0_61, %c0_62], %88 {strides = array<i32>} : memref<8x8xf32, #tpu.memory_space<vmem>>, vector<8x8xf32>,
      %c0_63 = arith.constant 0 : index
      %c0_64 = arith.constant 0 : index
      %90 = vector.load %arg6[%c0_63, %c0_64] : memref<8x1xf32, #tpu.memory_space<vmem>>, vector<8x1xf32>
      tpu.vector_store %arg6[%c0_63, %c0_64], %72 {strides = array<i32>} : memref<8x1xf32, #tpu.memory_space<vmem>>, vector<8x1xf32>,
    }
    %15 = tpu.assume_multiple %0, 8 : i32
    %16 = tpu.iota {dimensions = array<i32: 0>} : vector<8x8xi32>
    %17 = tpu.iota {dimensions = array<i32: 1>} : vector<8x8xi32>
    %c0_16 = arith.constant 0 : index
    %18 = arith.index_cast %15 : i32 to index
    %c0_17 = arith.constant 0 : index
    %19 = vector.load %arg3[%c0_16, %18, %c0_17] : memref<1x8x8xf32, #tpu.memory_space<vmem>>, vector<1x8x8xf32>
    %20 = vector.shape_cast %19 : vector<1x8x8xf32> to vector<8x8xf32>
    %c0_18 = arith.constant 0 : index
    %21 = arith.index_cast %15 : i32 to index
    %c0_19 = arith.constant 0 : index
    %22 = vector.load %arg4[%c0_18, %21, %c0_19] : memref<1x8x8xf32, #tpu.memory_space<vmem>>, vector<1x8x8xf32>
    %23 = vector.shape_cast %22 : vector<1x8x8xf32> to vector<8x8xf32>
    %24 = arith.cmpi sge, %16, %17 : vector<8x8xi32>
    %cst_20 = arith.constant dense<0.000000e+00> : vector<8x8xf32>
    %25 = tpu.matmul %8, %20, %cst_20 {dimension_numbers = #tpu.dot_dimension_numbers<[1], [1], [0], [0], [0, 0, 1, 0], [], []>} : vector<8x8xf32>, vector<8x8xf32>, vector<8x8xf32> -> vector<8x8xf32>
    %cst_21 = arith.constant 0xFF800000 : f32
    %26 = vector.broadcast %cst_21 : f32 to vector<8x8xf32>
    %27 = arith.select %24, %25, %26 : vector<8x8xi1>, vector<8x8xf32>
    %c0_22 = arith.constant 0 : index
    %c0_23 = arith.constant 0 : index
    %28 = vector.load %arg6[%c0_22, %c0_23] : memref<8x1xf32, #tpu.memory_space<vmem>>, vector<8x1xf32>
    %cst_24 = arith.constant dense<0xFF800000> : vector<8xf32>
    %29 = vector.multi_reduction <maximumf>, %27, %cst_24 [1] : vector<8x8xf32> to vector<8xf32>
    %30 = vector.shape_cast %29 : vector<8xf32> to vector<8x1xf32>
    %31 = arith.maximumf %28, %30 : vector<8x1xf32>
    %32 = arith.subf %28, %31 : vector<8x1xf32>
    %33 = math.exp %32 : vector<8x1xf32>
    %34 = vector.broadcast %31 : vector<8x1xf32> to vector<8x8xf32>
    %35 = arith.subf %27, %34 : vector<8x8xf32>
    %36 = math.exp %35 : vector<8x8xf32>
    %c0_25 = arith.constant 0 : index
    %c0_26 = arith.constant 0 : index
    %37 = vector.load %arg7[%c0_25, %c0_26] : memref<8x1xf32, #tpu.memory_space<vmem>>, vector<8x1xf32>
    %38 = arith.mulf %33, %37 : vector<8x1xf32>
    %cst_27 = arith.constant dense<0.000000e+00> : vector<8xf32>
    %39 = vector.multi_reduction <add>, %36, %cst_27 [1] : vector<8x8xf32> to vector<8xf32>
    %40 = vector.shape_cast %39 : vector<8xf32> to vector<8x1xf32>
    %41 = arith.addf %38, %40 : vector<8x1xf32>
    %c0_28 = arith.constant 0 : index
    %c0_29 = arith.constant 0 : index
    %42 = vector.load %arg7[%c0_28, %c0_29] : memref<8x1xf32, #tpu.memory_space<vmem>>, vector<8x1xf32>
    tpu.vector_store %arg7[%c0_28, %c0_29], %41 {strides = array<i32>} : memref<8x1xf32, #tpu.memory_space<vmem>>, vector<8x1xf32>,
    %c0_30 = arith.constant 0 : index
    %c0_31 = arith.constant 0 : index
    %43 = vector.load %arg8[%c0_30, %c0_31] : memref<8x8xf32, #tpu.memory_space<vmem>>, vector<8x8xf32>
    %44 = vector.broadcast %33 : vector<8x1xf32> to vector<8x8xf32>
    %45 = arith.mulf %44, %43 : vector<8x8xf32>
    %cst_32 = arith.constant dense<0.000000e+00> : vector<8x8xf32>
    %46 = tpu.matmul %36, %23, %cst_32 {dimension_numbers = #tpu.dot_dimension_numbers<[1], [0], [0], [1], [0, 0, 1, 1], [], []>} : vector<8x8xf32>, vector<8x8xf32>, vector<8x8xf32> -> vector<8x8xf32>
    %47 = arith.addf %45, %46 : vector<8x8xf32>
    %c0_33 = arith.constant 0 : index
    %c0_34 = arith.constant 0 : index
    %48 = vector.load %arg8[%c0_33, %c0_34] : memref<8x8xf32, #tpu.memory_space<vmem>>, vector<8x8xf32>
    tpu.vector_store %arg8[%c0_33, %c0_34], %47 {strides = array<i32>} : memref<8x8xf32, #tpu.memory_space<vmem>>, vector<8x8xf32>,
    %c0_35 = arith.constant 0 : index
    %c0_36 = arith.constant 0 : index
    %49 = vector.load %arg6[%c0_35, %c0_36] : memref<8x1xf32, #tpu.memory_space<vmem>>, vector<8x1xf32>
    tpu.vector_store %arg6[%c0_35, %c0_36], %31 {strides = array<i32>} : memref<8x1xf32, #tpu.memory_space<vmem>>, vector<8x1xf32>,
    %c0_37 = arith.constant 0 : index
    %c0_38 = arith.constant 0 : index
    %50 = vector.load %arg7[%c0_37, %c0_38] : memref<8x1xf32, #tpu.memory_space<vmem>>, vector<8x1xf32>
    %51 = tpu.reciprocal %50 : vector<8x1xf32> -> vector<8x1xf32>
    %c0_39 = arith.constant 0 : index
    %c0_40 = arith.constant 0 : index
    %52 = vector.load %arg8[%c0_39, %c0_40] : memref<8x8xf32, #tpu.memory_space<vmem>>, vector<8x8xf32>
    %53 = vector.broadcast %51 : vector<8x1xf32> to vector<8x8xf32>
    %54 = arith.mulf %52, %53 : vector<8x8xf32>
    %c0_41 = arith.constant 0 : index
    %c0_42 = arith.constant 0 : index
    %c0_43 = arith.constant 0 : index
    %55 = vector.load %arg5[%c0_41, %c0_42, %c0_43] : memref<1x8x8xf32, #tpu.memory_space<vmem>>, vector<1x8x8xf32>
    %56 = vector.shape_cast %55 : vector<1x8x8xf32> to vector<8x8xf32>
    %57 = vector.shape_cast %54 : vector<8x8xf32> to vector<1x8x8xf32>
    tpu.vector_store %arg5[%c0_41, %c0_42, %c0_43], %57 {strides = array<i32>} : memref<1x8x8xf32, #tpu.memory_space<vmem>>, vector<1x8x8xf32>,
    return
  }
  func.func @transform_0(%arg0: i32, %arg1: i32) -> (i32, i32, i32) {
    %c0_i32 = arith.constant 0 : i32
    %c0_i32_0 = arith.constant 0 : i32
    return %arg0, %arg1, %c0_i32 : i32, i32, i32
  }
  func.func @transform_1(%arg0: i32, %arg1: i32) -> (i32, i32, i32) {
    %c0_i32 = arith.constant 0 : i32
    %c0_i32_0 = arith.constant 0 : i32
    %c0_i32_1 = arith.constant 0 : i32
    return %arg0, %c0_i32, %c0_i32_0 : i32, i32, i32
  }
  func.func @transform_2(%arg0: i32, %arg1: i32) -> (i32, i32, i32) {
    %c0_i32 = arith.constant 0 : i32
    %c0_i32_0 = arith.constant 0 : i32
    %c0_i32_1 = arith.constant 0 : i32
    return %arg0, %c0_i32, %c0_i32_0 : i32, i32, i32
  }
  func.func @transform_3(%arg0: i32, %arg1: i32) -> (i32, i32, i32) {
    %c0_i32 = arith.constant 0 : i32
    %c0_i32_0 = arith.constant 0 : i32
    return %arg0, %arg1, %c0_i32 : i32, i32, i32
  }
}

module attributes {stable_mosaic.version = 11 : i64} {
  func.func @_matmul_kernel(%arg0: i32, %arg1: i32, %arg2: i32, %arg3: memref<16x32xbf16, #tpu.memory_space<vmem>>, %arg4: memref<32x32xbf16, #tpu.memory_space<vmem>>, %arg5: memref<16x32xf32, #tpu.memory_space<vmem>>, %arg6: memref<16x32xf32, #tpu.memory_space<vmem>>) attributes {dimension_semantics = [#tpu.dimension_semantics<parallel>, #tpu.dimension_semantics<parallel>, #tpu.dimension_semantics<arbitrary>], iteration_bounds = array<i64: 1, 1, 1>, scalar_prefetch = 0 : i64, scratch_operands = 1 : i64, tpu.core_type = #tpu.core_type<tc>, window_params = [{transform_indices = @transform_0, window_bounds = array<i64: 16, 32>}, {transform_indices = @transform_1, window_bounds = array<i64: 32, 32>}, {transform_indices = @transform_2, window_bounds = array<i64: 16, 32>}]} {
    %c0_i32 = arith.constant 0 : i32
    %0 = arith.cmpi eq, %arg2, %c0_i32 : i32
    %1 = arith.extui %0 : i1 to i32
    %c0_i32_0 = arith.constant 0 : i32
    %2 = arith.cmpi ne, %1, %c0_i32_0 : i32
    scf.if %2 {
      %cst_10 = arith.constant 0.000000e+00 : f32
      %12 = vector.broadcast %cst_10 : f32 to vector<16x32xf32>
      %c0_11 = arith.constant 0 : index
      %c0_12 = arith.constant 0 : index
      %13 = vector.load %arg6[%c0_11, %c0_12] : memref<16x32xf32, #tpu.memory_space<vmem>>, vector<16x32xf32>
      tpu.vector_store %arg6[%c0_11, %c0_12], %12 {strides = array<i32>} : memref<16x32xf32, #tpu.memory_space<vmem>>, vector<16x32xf32>,
    } else {
    }
    %c0 = arith.constant 0 : index
    %c0_1 = arith.constant 0 : index
    %3 = vector.load %arg6[%c0, %c0_1] : memref<16x32xf32, #tpu.memory_space<vmem>>, vector<16x32xf32>
    %c0_2 = arith.constant 0 : index
    %c0_3 = arith.constant 0 : index
    %4 = vector.load %arg3[%c0_2, %c0_3] : memref<16x32xbf16, #tpu.memory_space<vmem>>, vector<16x32xbf16>
    %c0_4 = arith.constant 0 : index
    %c0_5 = arith.constant 0 : index
    %5 = vector.load %arg4[%c0_4, %c0_5] : memref<32x32xbf16, #tpu.memory_space<vmem>>, vector<32x32xbf16>
    %cst = arith.constant dense<0.000000e+00> : vector<16x32xf32>
    %6 = tpu.matmul %4, %5, %cst {dimension_numbers = #tpu.dot_dimension_numbers<[1], [0], [0], [1], [0, 0, 1, 1], [], []>} : vector<16x32xbf16>, vector<32x32xbf16>, vector<16x32xf32> -> vector<16x32xf32>
    %7 = arith.addf %3, %6 : vector<16x32xf32>
    %c0_6 = arith.constant 0 : index
    %c0_7 = arith.constant 0 : index
    %8 = vector.load %arg6[%c0_6, %c0_7] : memref<16x32xf32, #tpu.memory_space<vmem>>, vector<16x32xf32>
    tpu.vector_store %arg6[%c0_6, %c0_7], %7 {strides = array<i32>} : memref<16x32xf32, #tpu.memory_space<vmem>>, vector<16x32xf32>,
    %c0_i32_8 = arith.constant 0 : i32
    %9 = arith.cmpi eq, %arg2, %c0_i32_8 : i32
    %10 = arith.extui %9 : i1 to i32
    %c0_i32_9 = arith.constant 0 : i32
    %11 = arith.cmpi ne, %10, %c0_i32_9 : i32
    scf.if %11 {
      %c0_10 = arith.constant 0 : index
      %c0_11 = arith.constant 0 : index
      %12 = vector.load %arg6[%c0_10, %c0_11] : memref<16x32xf32, #tpu.memory_space<vmem>>, vector<16x32xf32>
      %c0_12 = arith.constant 0 : index
      %c0_13 = arith.constant 0 : index
      %13 = vector.load %arg5[%c0_12, %c0_13] : memref<16x32xf32, #tpu.memory_space<vmem>>, vector<16x32xf32>
      tpu.vector_store %arg5[%c0_12, %c0_13], %12 {strides = array<i32>} : memref<16x32xf32, #tpu.memory_space<vmem>>, vector<16x32xf32>,
    } else {
    }
    return
  }
  func.func @transform_0(%arg0: i32, %arg1: i32, %arg2: i32) -> (i32, i32) {
    %c0_i32 = arith.constant 0 : i32
    return %arg0, %arg2 : i32, i32
  }
  func.func @transform_1(%arg0: i32, %arg1: i32, %arg2: i32) -> (i32, i32) {
    %c0_i32 = arith.constant 0 : i32
    return %arg2, %arg1 : i32, i32
  }
  func.func @transform_2(%arg0: i32, %arg1: i32, %arg2: i32) -> (i32, i32) {
    %c0_i32 = arith.constant 0 : i32
    return %arg0, %arg1 : i32, i32
  }
}

</mosaic_0001>

<llo_original>
// kernel: causal_self_attention.3
$region0: #{causal_self_attention.3}
  #allocation0 [shape = 'u32[]', space=smem, size = 0x4, offset = 0x4, fixed_abs, tag = 'smem constant byte address 0x4 - core index']
  #allocation1 [shape = 'u32[144,128]{1,0:T(1,128)}', space=vmem, size = 0x12000, scoped, tag = 'internal scratch']
  #allocation2 [shape = 'f32[16,96]{1,0:T(8,128)}', space=vmem, size = 0x2000, scoped, tag = 'scratch operand']
  %s0 = inlined_call_operand.hbm [shape: bf16[16,32], index: 0, kind: input, shape index: {}]
  %s1 = inlined_call_operand.hbm [shape: bf16[32,96], index: 1, kind: input, shape index: {}]
  %s2 = inlined_call_operand.hbm [shape: f32[16,96], index: 2, kind: output, shape index: {}]
  %s3 = sld [smem:[#allocation0]]
  $region34: #{causal_self_attention.3} parent=0
    _
  %s5 = ssub.s32 1, %s3
  %s6 = scalar_select 0, %s5, %s3
  $region1: #{causal_self_attention.3} parent=0
    #allocation3 [shape = 'u8[4096]{0}', space=vmem, size = 0x1000, scoped, tag = 'input window, operand 0, single buffered']
    #allocation4 [shape = 's32[1]{0}', space=sflag, size = 0x4, scoped, tag = 'scoped memory for causal_self_attention.3']
    #allocation5 [shape = 's32[1]{0}', space=sflag, size = 0x4, scoped, tag = 'scoped memory for causal_self_attention.3']
    #allocation6 [shape = 'u8[8192]{0}', space=vmem, size = 0x2000, scoped, tag = 'input window, operand 1, single buffered']
    #allocation7 [shape = 's32[1]{0}', space=sflag, size = 0x4, scoped, tag = 'scoped memory for causal_self_attention.3']
    #allocation8 [shape = 'u8[8192]{0}', space=vmem, size = 0x2000, scoped, tag = 'output window, operand 0, single buffered']
    %7 = vsyncpa [#allocation4], 0
    %8 = vsyncpa [#allocation7], 0
    %9 = vsyncpa [#allocation5], 0
    // Predicated region
    $region2: #{causal_self_attention.3} parent=1 // pred_check
      _
    $region3: #{causal_self_attention.3} parent=1 // pred_check_branch
      %11 = sbr.rel (0) target = $region5
    $region4: #{causal_self_attention.3} parent=1 // pred_region
      %s13 = ssub.s32 128, 128
      %14 = vsyncadd [#allocation4], %s13
      %s15 = sshll.u32 [#allocation3], 4
      %s16 = int_to_ptr.vmem [resolvable:$true] %s15
      %21 = dma.hbm_to_vmem [thread:$0]  %s0, 128, %s16, [#allocation4], 64, 64, 4
    $region5: #{causal_self_attention.3} parent=1 // pred_fallthru
      _
    // Predicated region
    $region6: #{causal_self_attention.3} parent=1 // pred_check
      _
    $region7: #{causal_self_attention.3} parent=1 // pred_check_branch
      %23 = sbr.rel (0) target = $region9
    $region8: #{causal_self_attention.3} parent=1 // pred_region
      %s25 = ssub.s32 256, 256
      %26 = vsyncadd [#allocation7], %s25
      %s27 = sshll.u32 [#allocation6], 4
      %s28 = int_to_ptr.vmem [resolvable:$true] %s27
      %33 = dma.hbm_to_vmem [thread:$0]  %s1, 256, %s28, [#allocation7], 64, 64, 4
    $region9: #{causal_self_attention.3} parent=1 // pred_fallthru
      _
    // Predicated region
    $region10: #{causal_self_attention.3} parent=1 // pred_check
      _
    $region11: #{causal_self_attention.3} parent=1 // pred_check_branch
      %35 = sbr.rel (0) target = $region13
    $region12: #{causal_self_attention.3} parent=1 // pred_region
      %36 = dma.done [#allocation4], 128
    $region13: #{causal_self_attention.3} parent=1 // pred_fallthru
      _
    // Predicated region
    $region14: #{causal_self_attention.3} parent=1 // pred_check
      _
    $region15: #{causal_self_attention.3} parent=1 // pred_check_branch
      %38 = sbr.rel (0) target = $region17
    $region16: #{causal_self_attention.3} parent=1 // pred_region
      %39 = dma.done [#allocation7], 256
    $region17: #{causal_self_attention.3} parent=1 // pred_fallthru
      _
    %p41 = scmp.eq.s32.totalorder 0, 0
    // Predicated region
    $region18: #{causal_self_attention.3} parent=1 // pred_check
      %p42 = pneg %p41
    $region19: #{causal_self_attention.3} parent=1 // pred_check_branch
      %44 = sbr.rel (%p42) target = $region21
    $region20: #{causal_self_attention.3} parent=1 // pred_region
      %vm45 = vcmask 785408
      %46 = vst.msk [vmem:[#allocation2] sm:$0xff] %vm45, 0.0
      %47 = vst.msk [vmem:[#allocation2 + $0x8] sm:$0xff] %vm45, 0.0
    $region21: #{causal_self_attention.3} parent=1 // pred_fallthru
      _
    %v48 = vld [vmem:[#allocation2] sm:$0xff]
    %v49 = vld [vmem:[#allocation2 + $0x8] sm:$0xff]
    %v50 = vld [vmem:[#allocation3] sm:$0xf]
    %v51 = vld [vmem:[#allocation3 + $0x4] sm:$0xf]
    %v52 = vld [vmem:[#allocation6] sm:$0xf]
    %v53 = vld [vmem:[#allocation6 + $0x4] sm:$0xf]
    %v54 = vld [vmem:[#allocation6 + $0x8] sm:$0xf]
    %v55 = vld [vmem:[#allocation6 + $0xc] sm:$0xf]
    %v58 = vunpack.c.l.b16 %v50
    %v59 = vunpack.c.l.b16 %v51
    %v60 = vpack.c.b16 %v59, %v58
    %v65 = vunpack.c.l.b16 %v52
    %v66 = vunpack.c.l.b16 %v53
    %v67 = vunpack.c.l.b16 %v54
    %v68 = vunpack.c.l.b16 %v55
    %v69 = vpack.c.b16 %v66, %v65
    %v70 = vpack.c.b16 %v68, %v67
    %vm73 = vcmask 261120
    %v75 = vsel %vm73, %v60, 0
    %77 = vmatprep.subr.bf16.mxu0 0
    %78 = vmatpush1.bf16.msra.mxu0 %v69
    %79 = vmatprep.subr.bf16.mxu0 0
    %80 = vmatpush1.bf16.msra.mxu0 %v70
    %81 = vmatprep.subr.bf16.mxu0 0
    %82 = vmatpush1.bf16.msra.mxu0 0
    %83 = vmatprep.subr.bf16.mxu0 0
    %84 = vmatpush1.bf16.msra.mxu0 0
    %85 = vmatprep.subr.bf16.mxu0 0
    %86 = vmatpush1.bf16.msra.mxu0 0
    %87 = vmatprep.subr.bf16.mxu0 0
    %88 = vmatpush1.bf16.msra.mxu0 0
    %89 = vmatprep.subr.bf16.mxu0 0
    %90 = vmatpush1.bf16.msra.mxu0 0
    %91 = vmatprep.subr.bf16.mxu0 0
    %92 = vmatpush1.bf16.msra.mxu0 0
    %93 = vmatprep.subr.bf16.mxu0 0
    %94 = vmatpush1.bf16.msra.mxu0 0
    %95 = vmatprep.subr.bf16.mxu0 0
    %96 = vmatpush1.bf16.msra.mxu0 0
    %97 = vmatprep.subr.bf16.mxu0 0
    %98 = vmatpush1.bf16.msra.mxu0 0
    %99 = vmatprep.subr.bf16.mxu0 0
    %100 = vmatpush1.bf16.msra.mxu0 0
    %101 = vmatprep.subr.bf16.mxu0 0
    %102 = vmatpush1.bf16.msra.mxu0 0
    %103 = vmatprep.subr.bf16.mxu0 0
    %104 = vmatpush1.bf16.msra.mxu0 0
    %105 = vmatprep.subr.bf16.mxu0 0
    %106 = vmatpush1.bf16.msra.mxu0 0
    %107 = vmatprep.subr.bf16.mxu0 0
    %108 = vmatpush1.bf16.msra.mxu0 0
    %109 = vmatprep.mubr.bf16.mxu0 0
    %110 = vmatmul.mubr.bf16.gmra.mrb[0].mxu0 %v75
    %v111 = vpop.f32.mrb[0].mxu0
    %v112 = vadd.f32 0.0, %v111
    %v113 = vpop.f32.mrb[0].mxu0
    %v114 = vpop.f32.mrb[0].mxu0
    %v115 = vadd.f32 0.0, %v114
    %v116 = vpop.f32.mrb[0].mxu0
    %117 = vdwg.mxu0
    %v118 = vadd.f32 %v48, %v112
    %v119 = vadd.f32 %v49, %v115
    %vm120 = vcmask 785408
    %121 = vst.msk [vmem:[#allocation2] sm:$0xff] %vm120, %v118
    %122 = vst.msk [vmem:[#allocation2 + $0x8] sm:$0xff] %vm120, %v119
    // Predicated region
    $region22: #{causal_self_attention.3} parent=1 // pred_check
      %p123 = pneg %p41
    $region23: #{causal_self_attention.3} parent=1 // pred_check_branch
      %125 = sbr.rel (%p123) target = $region25
    $region24: #{causal_self_attention.3} parent=1 // pred_region
      %v126 = vld [vmem:[#allocation2] sm:$0xff]
      %v127 = vld [vmem:[#allocation2 + $0x8] sm:$0xff]
      %128 = vst.msk [vmem:[#allocation8] sm:$0xff] %vm120, %v126
      %129 = vst.msk [vmem:[#allocation8 + $0x8] sm:$0xff] %vm120, %v127
    $region25: #{causal_self_attention.3} parent=1 // pred_fallthru
      _
    // Predicated region
    $region26: #{causal_self_attention.3} parent=1 // pred_check
      _
    $region27: #{causal_self_attention.3} parent=1 // pred_check_branch
      %131 = sbr.rel (0) target = $region29
    $region28: #{causal_self_attention.3} parent=1 // pred_region
      %s133 = ssub.s32 256, 256
      %134 = vsyncadd [#allocation5], %s133
      %s135 = sshll.u32 [#allocation8], 4
      %s136 = int_to_ptr.vmem [resolvable:$true] %s135
      %141 = dma.vmem_to_hbm [thread:$0]  %s136, 256, %s2, [#allocation5], 128, 128, 8
    $region29: #{causal_self_attention.3} parent=1 // pred_fallthru
      _
    // Predicated region
    $region30: #{causal_self_attention.3} parent=1 // pred_check
      _
    $region31: #{causal_self_attention.3} parent=1 // pred_check_branch
      %143 = sbr.rel (0) target = $region33
    $region32: #{causal_self_attention.3} parent=1 // pred_region
      %144 = dma.done [#allocation5], 256
    $region33: #{causal_self_attention.3} parent=1 // pred_fallthru
      _
    %145 = vsyncpa [#allocation4], 1
    %146 = vsyncpa [#allocation7], 1
    %147 = vsyncpa [#allocation5], 1

// kernel: causal_self_attention.4
$region0: #{causal_self_attention.4}
  #allocation0 [shape = 'u32[]', space=smem, size = 0x4, offset = 0x4, fixed_abs, tag = 'smem constant byte address 0x4 - core index']
  #allocation1 [shape = 'u32[144,128]{1,0:T(1,128)}', space=vmem, size = 0x12000, scoped, tag = 'internal scratch']
  #allocation2 [shape = 'f32[8,1]{1,0:T(8,128)}', space=vmem, size = 0x1000, scoped, tag = 'scratch operand']
  #allocation3 [shape = 'f32[8,1]{1,0:T(8,128)}', space=vmem, size = 0x1000, scoped, tag = 'scratch operand']
  #allocation4 [shape = 'f32[8,8]{1,0:T(8,128)}', space=vmem, size = 0x1000, scoped, tag = 'scratch operand']
  %s0 = inlined_call_operand.hbm [shape: f32[8,8,8], index: 0, kind: input, shape index: {}]
  %s1 = inlined_call_operand.hbm [shape: f32[8,8,8], index: 1, kind: input, shape index: {}]
  %s2 = inlined_call_operand.hbm [shape: f32[8,8,8], index: 2, kind: input, shape index: {}]
  %s3 = inlined_call_operand.hbm [shape: f32[8,8,8], index: 3, kind: output, shape index: {}]
  %s4 = sld [smem:[#allocation0]]
  $region64: #{causal_self_attention.4} parent=0
    _
  %s6 = ssub.s32 1, %s4
  %s7 = scalar_select 0, %s6, %s4
  $region1: #{causal_self_attention.4} parent=0
    #allocation5 [shape = 'u8[8192]{0}', space=vmem, size = 0x2000, scoped, tag = 'input window, operand 0']
    #allocation6 [shape = 's32[2]{0}', space=sflag, size = 0x8, scoped, tag = 'scoped memory for causal_self_attention.4']
    #allocation7 [shape = 's32[2]{0}', space=sflag, size = 0x8, scoped, tag = 'scoped memory for causal_self_attention.4']
    #allocation8 [shape = 'u8[8192]{0}', space=vmem, size = 0x2000, scoped, tag = 'input window, operand 1']
    #allocation9 [shape = 's32[2]{0}', space=sflag, size = 0x8, scoped, tag = 'scoped memory for causal_self_attention.4']
    #allocation10 [shape = 'u8[8192]{0}', space=vmem, size = 0x2000, scoped, tag = 'input window, operand 2']
    #allocation11 [shape = 'u8[8192]{0}', space=vmem, size = 0x2000, scoped, tag = 'output window, operand 0']
    %8 = vsyncpa [#allocation6], 0
    %s9 = scalar_lea.sflag [#allocation6], 1
    %10 = vsyncpa %s9, 0
    %11 = vsyncpa [#allocation9], 0
    %s12 = scalar_lea.sflag [#allocation9], 1
    %13 = vsyncpa %s12, 0
    %14 = vsyncpa [#allocation7], 0
    %s15 = scalar_lea.sflag [#allocation7], 1
    %16 = vsyncpa %s15, 0
    loop: start=0, step=1, limit=10
    $region2: #{causal_self_attention.4} parent=1 // loop_pre_header
      _
    $region3: #{causal_self_attention.4} parent=1 // loop_header
      %s18 = sphi 0, %s22
      %p19 = scmp.ge.s32.totalorder %s18, 10
      %s25 = sphi 0, %s37
      %s26 = sphi 0, %s33
      %s27 = sphi 0, %s25
      %s28 = sphi 0, %s26
      %s29 = sphi 0, %s27
      %s30 = sphi 0, %s28
      %s42 = sphi 0, %s44
      %s45 = sphi 0, %s42
      %s46 = sphi 0, %s45
      %s62 = sphi 0, %s46
      %s68 = sphi 0, %s70
      %s71 = sphi 0, %s68
      %s72 = sphi 0, %s71
      %s88 = sphi 0, %s72
      %s94 = sphi 0, %s96
      %s97 = sphi 0, %s94
      %s98 = sphi 0, %s97
      %s114 = sphi 0, %s98
      %s122 = sphi 0, %s124
      %s125 = sphi 0, %s122
      %s126 = sphi 0, %s125
      %s142 = sphi 0, %s126
    $region4: #{causal_self_attention.4} parent=1 // loop_header_branch
      %21 = sbr.rel (%p19) target = $region8
    $region5: #{causal_self_attention.4} parent=1 // loop_body
      %s23 = ssub.s32 %s18, 1
      %s24 = ssub.s32 %s18, 2
      %s31 = sadd.s32 1, %s26
      %p32 = scmp.ge.s32.totalorder %s31, 1
      %s33 = scalar_select %p32, 0, %s31
      %s34 = sadd.s32 1, %s25
      %s35 = scalar_select %p32, %s34, %s25
      %p36 = scmp.ge.s32.totalorder %s35, 8
      %s37 = scalar_select %p36, 0, %s35
      %s38 = ssub.s32 %s25, %s37
      %s39 = ssub.s32 %s26, %s33
      %s40 = sor.u32 %s38, %s39
      %p41 = scmp.eq.s32.totalorder %s40, 0
      %s43 = sadd.s32 %s42, 1
      %s44 = scalar_select %p41, %s42, %s43
      %p47 = pneg %p41
      %p48 = scmp.eq.s32.totalorder %s18, 7
      %p49 = por %p47, %p48
      %p50 = scmp.ne.s32.totalorder %s42, %s45
      %p51 = scmp.eq.s32.totalorder %s18, 0
      %p52 = por %p50, %p51
      %p53 = scmp.ne.s32.totalorder %s42, %s45
      %p54 = scmp.eq.s32.totalorder %s23, 7
      %p55 = por %p53, %p54
      %p56 = scmp.ne.s32.totalorder %s45, %s46
      %p57 = scmp.eq.s32.totalorder %s23, 0
      %p58 = por %p56, %p57
      %p59 = scmp.ne.s32.totalorder %s45, %s46
      %p60 = scmp.eq.s32.totalorder %s24, 7
      %p61 = por %p59, %p60
      %p63 = scmp.ne.s32.totalorder %s46, %s62
      %p64 = scmp.eq.s32.totalorder %s24, 0
      %p65 = por %p63, %p64
      %s66 = ssub.s32 %s25, %s37
      %p67 = scmp.eq.s32.totalorder %s66, 0
      %s69 = sadd.s32 %s68, 1
      %s70 = scalar_select %p67, %s68, %s69
      %p73 = pneg %p67
      %p74 = scmp.eq.s32.totalorder %s18, 7
      %p75 = por %p73, %p74
      %p76 = scmp.ne.s32.totalorder %s68, %s71
      %p77 = scmp.eq.s32.totalorder %s18, 0
      %p78 = por %p76, %p77
      %p79 = scmp.ne.s32.totalorder %s68, %s71
      %p80 = scmp.eq.s32.totalorder %s23, 7
      %p81 = por %p79, %p80
      %p82 = scmp.ne.s32.totalorder %s71, %s72
      %p83 = scmp.eq.s32.totalorder %s23, 0
      %p84 = por %p82, %p83
      %p85 = scmp.ne.s32.totalorder %s71, %s72
      %p86 = scmp.eq.s32.totalorder %s24, 7
      %p87 = por %p85, %p86
      %p89 = scmp.ne.s32.totalorder %s72, %s88
      %p90 = scmp.eq.s32.totalorder %s24, 0
      %p91 = por %p89, %p90
      %s92 = ssub.s32 %s25, %s37
      %p93 = scmp.eq.s32.totalorder %s92, 0
      %s95 = sadd.s32 %s94, 1
      %s96 = scalar_select %p93, %s94, %s95
      %p99 = pneg %p93
      %p100 = scmp.eq.s32.totalorder %s18, 7
      %p101 = por %p99, %p100
      %p102 = scmp.ne.s32.totalorder %s94, %s97
      %p103 = scmp.eq.s32.totalorder %s18, 0
      %p104 = por %p102, %p103
      %p105 = scmp.ne.s32.totalorder %s94, %s97
      %p106 = scmp.eq.s32.totalorder %s23, 7
      %p107 = por %p105, %p106
      %p108 = scmp.ne.s32.totalorder %s97, %s98
      %p109 = scmp.eq.s32.totalorder %s23, 0
      %p110 = por %p108, %p109
      %p111 = scmp.ne.s32.totalorder %s97, %s98
      %p112 = scmp.eq.s32.totalorder %s24, 7
      %p113 = por %p111, %p112
      %p115 = scmp.ne.s32.totalorder %s98, %s114
      %p116 = scmp.eq.s32.totalorder %s24, 0
      %p117 = por %p115, %p116
      %s118 = ssub.s32 %s25, %s37
      %s119 = ssub.s32 %s26, %s33
      %s120 = sor.u32 %s118, %s119
      %p121 = scmp.eq.s32.totalorder %s120, 0
      %s123 = sadd.s32 %s122, 1
      %s124 = scalar_select %p121, %s122, %s123
      %p127 = pneg %p121
      %p128 = scmp.eq.s32.totalorder %s18, 7
      %p129 = por %p127, %p128
      %p130 = scmp.ne.s32.totalorder %s122, %s125
      %p131 = scmp.eq.s32.totalorder %s18, 0
      %p132 = por %p130, %p131
      %p133 = scmp.ne.s32.totalorder %s122, %s125
      %p134 = scmp.eq.s32.totalorder %s23, 7
      %p135 = por %p133, %p134
      %p136 = scmp.ne.s32.totalorder %s125, %s126
      %p137 = scmp.eq.s32.totalorder %s23, 0
      %p138 = por %p136, %p137
      %p139 = scmp.ne.s32.totalorder %s125, %s126
      %p140 = scmp.eq.s32.totalorder %s24, 7
      %p141 = por %p139, %p140
      %p143 = scmp.ne.s32.totalorder %s126, %s142
      %p144 = scmp.eq.s32.totalorder %s24, 0
      %p145 = por %p143, %p144
      %p146 = scmp.le.s32.totalorder 1, %s18
      %p147 = scmp.lt.s32.totalorder %s18, 9
      %p148 = pnand %p146, %p147
      %p149 = pneg %p148
      // Predicated region
      $region9: #{causal_self_attention.4} parent=5 // pred_check
        _
      $region10: #{causal_self_attention.4} parent=5 // pred_check_branch
        %151 = sbr.rel (%p148) target = $region12
      $region11: #{causal_self_attention.4} parent=5 // pred_region
        %s152 = ssub.s32 %s18, 1
      $region12: #{causal_self_attention.4} parent=5 // pred_fallthru
        _
      %p153 = scmp.lt.s32.totalorder %s18, 8
      // Predicated region
      $region13: #{causal_self_attention.4} parent=5 // pred_check
        %p154 = pneg %p153
      $region14: #{causal_self_attention.4} parent=5 // pred_check_branch
        %156 = sbr.rel (%p154) target = $region16
      $region15: #{causal_self_attention.4} parent=5 // pred_region
        // Predicated region
        $region17: #{causal_self_attention.4} parent=15 // pred_check
          %p157 = pneg %p52
        $region18: #{causal_self_attention.4} parent=15 // pred_check_branch
          %159 = sbr.rel (%p157) target = $region20
        $region19: #{causal_self_attention.4} parent=15 // pred_region
          %s160 = sand.u32 %s42, 1
          %s161 = scalar_lea.sflag [#allocation6], %s160
          %s162 = sand.u32 %s42, 1
          %s163 = smul.addr %s162, 8
          %s164 = scalar_lea.vmem [#allocation5], %s163
          %s166 = ssub.s32 128, 128
          %167 = vsyncadd %s161, %s166
          %s168 = sadd.s32 %s26, %s25
          %s169 = smul.addr %s168, 128
          %s170 = scalar_lea.hbm %s0, %s169
          %s172 = sshll.u32 %s164, 4
          %s173 = int_to_ptr.vmem [resolvable:$true] %s172
          %175 = dma.hbm_to_vmem [thread:$0]  %s170, 128, %s173, %s161
        $region20: #{causal_self_attention.4} parent=15 // pred_fallthru
          _
        // Predicated region
        $region21: #{causal_self_attention.4} parent=15 // pred_check
          %p176 = pneg %p78
        $region22: #{causal_self_attention.4} parent=15 // pred_check_branch
          %178 = sbr.rel (%p176) target = $region24
        $region23: #{causal_self_attention.4} parent=15 // pred_region
          %s179 = sand.u32 %s18, 1
          %s180 = scalar_lea.sflag [#allocation9], %s179
          %s181 = sand.u32 %s68, 1
          %s182 = smul.addr %s181, 8
          %s183 = scalar_lea.vmem [#allocation8], %s182
          %s185 = ssub.s32 128, 128
          %186 = vsyncadd %s180, %s185
          %s187 = smul.addr %s25, 128
          %s188 = scalar_lea.hbm %s1, %s187
          %s190 = sshll.u32 %s183, 4
          %s191 = int_to_ptr.vmem [resolvable:$true] %s190
          %193 = dma.hbm_to_vmem [thread:$0]  %s188, 128, %s191, %s180
        $region24: #{causal_self_attention.4} parent=15 // pred_fallthru
          _
        // Predicated region
        $region25: #{causal_self_attention.4} parent=15 // pred_check
          %p194 = pneg %p104
        $region26: #{causal_self_attention.4} parent=15 // pred_check_branch
          %196 = sbr.rel (%p194) target = $region28
        $region27: #{causal_self_attention.4} parent=15 // pred_region
          %s197 = sand.u32 %s18, 1
          %s198 = scalar_lea.sflag [#allocation9], %s197
          %s199 = sand.u32 %s94, 1
          %s200 = smul.addr %s199, 8
          %s201 = scalar_lea.vmem [#allocation10], %s200
          %s203 = ssub.s32 128, 128
          %204 = vsyncadd %s198, %s203
          %s205 = smul.addr %s25, 128
          %s206 = scalar_lea.hbm %s2, %s205
          %s208 = sshll.u32 %s201, 4
          %s209 = int_to_ptr.vmem [resolvable:$true] %s208
          %211 = dma.hbm_to_vmem [thread:$0]  %s206, 128, %s209, %s198
        $region28: #{causal_self_attention.4} parent=15 // pred_fallthru
          _
      $region16: #{causal_self_attention.4} parent=5 // pred_fallthru
        _
      %p212 = scmp.le.s32.totalorder 1, %s18
      %p213 = scmp.lt.s32.totalorder %s18, 9
      %p214 = pnand %p212, %p213
      %p215 = pneg %p214
      // Predicated region
      $region29: #{causal_self_attention.4} parent=5 // pred_check
        _
      $region30: #{causal_self_attention.4} parent=5 // pred_check_branch
        %217 = sbr.rel (%p214) target = $region32
      $region31: #{causal_self_attention.4} parent=5 // pred_region
        %s218 = ssub.s32 %s18, 1
        %s219 = sand.u32 %s45, 1
        %s220 = scalar_lea.sflag [#allocation6], %s219
        %s221 = sand.u32 %s45, 1
        %s222 = smul.addr %s221, 8
        %s223 = scalar_lea.vmem [#allocation5], %s222
        // Predicated region
        $region33: #{causal_self_attention.4} parent=31 // pred_check
          %p224 = pneg %p58
        $region34: #{causal_self_attention.4} parent=31 // pred_check_branch
          %226 = sbr.rel (%p224) target = $region36
        $region35: #{causal_self_attention.4} parent=31 // pred_region
          %227 = dma.done %s220, 128
        $region36: #{causal_self_attention.4} parent=31 // pred_fallthru
          _
        %s228 = sand.u32 %s23, 1
        %s229 = scalar_lea.sflag [#allocation9], %s228
        %s230 = sand.u32 %s71, 1
        %s231 = smul.addr %s230, 8
        %s232 = scalar_lea.vmem [#allocation8], %s231
        // Predicated region
        $region37: #{causal_self_attention.4} parent=31 // pred_check
          %p233 = pneg %p84
        $region38: #{causal_self_attention.4} parent=31 // pred_check_branch
          %235 = sbr.rel (%p233) target = $region40
        $region39: #{causal_self_attention.4} parent=31 // pred_region
          %236 = dma.done %s229, 128
        $region40: #{causal_self_attention.4} parent=31 // pred_fallthru
          _
        %s237 = sand.u32 %s23, 1
        %s238 = scalar_lea.sflag [#allocation9], %s237
        %s239 = sand.u32 %s97, 1
        %s240 = smul.addr %s239, 8
        %s241 = scalar_lea.vmem [#allocation10], %s240
        // Predicated region
        $region41: #{causal_self_attention.4} parent=31 // pred_check
          %p242 = pneg %p110
        $region42: #{causal_self_attention.4} parent=31 // pred_check_branch
          %244 = sbr.rel (%p242) target = $region44
        $region43: #{causal_self_attention.4} parent=31 // pred_region
          %245 = dma.done %s238, 128
        $region44: #{causal_self_attention.4} parent=31 // pred_fallthru
          _
        %s246 = sand.u32 %s45, 1
        %s247 = scalar_lea.sflag [#allocation6], %s246
        %s248 = sand.u32 %s45, 1
        %s249 = smul.addr %s248, 8
        %s250 = scalar_lea.vmem [#allocation5], %s249
        %p251 = pneg %p58
        %p252 = pneg %p55
        %s253 = sand.u32 %s23, 1
        %s254 = scalar_lea.sflag [#allocation9], %s253
        %s255 = sand.u32 %s71, 1
        %s256 = smul.addr %s255, 8
        %s257 = scalar_lea.vmem [#allocation8], %s256
        %p258 = pneg %p84
        %p259 = pneg %p81
        %s260 = sand.u32 %s23, 1
        %s261 = scalar_lea.sflag [#allocation9], %s260
        %s262 = sand.u32 %s97, 1
        %s263 = smul.addr %s262, 8
        %s264 = scalar_lea.vmem [#allocation10], %s263
        %p265 = pneg %p110
        %p266 = pneg %p107
        %p267 = pneg %p138
        %p268 = pneg %p135
        %s269 = sand.u32 %s125, 1
        %s270 = scalar_lea.sflag [#allocation7], %s269
        %s271 = sand.u32 %s125, 1
        %s272 = smul.addr %s271, 8
        %s273 = scalar_lea.vmem [#allocation11], %s272
        %s274 = smul.u32 %s28, 8
        %vm275 = vcmask 7168
        %276 = vst.msk [vmem:[#allocation2] sm:$0xff] %vm275, -inf
        %277 = vst.msk [vmem:[#allocation3] sm:$0xff] %vm275, 0.0
        %vm278 = vcmask 64512
        %279 = vst.msk [vmem:[#allocation4] sm:$0xff] %vm278, 0.0
        %v280 = vld [vmem:[%s223] sm:$0xff]
        // While loop
        $region45: #{causal_self_attention.4} parent=31 // loop_pre_header
          _
        $region46: #{causal_self_attention.4} parent=31 // loop_header
          %s282 = sphi 0, %s284
          %p283 = scmp.ge.s32.totalorder %s282, %s28
        $region47: #{causal_self_attention.4} parent=31 // loop_header_branch
          %286 = sbr.rel (%p283) target = $region51
        $region48: #{causal_self_attention.4} parent=31 // loop_body
          %s287 = smul.u32 %s282, 8
          %s288 = scalar_lea.vmem %s232, %s287 [#allocation8]
          %v289 = vld [vmem:[%s288] sm:$0xff]
          %s290 = scalar_lea.vmem %s241, %s287 [#allocation10]
          %v291 = vld [vmem:[%s290] sm:$0xff]
          %v293 = vsel %vm278, %v280, 0
          %v296 = vsel %vm278, %v289, 0
          %298 = vmatprep.subr.mxu0 0.0
          %299 = vmatpush1.xpose.msra.mxu0 %v296
          %300 = vmatprep.subr.mxu0 0.0
          %301 = vmatpush1.xpose.msra.mxu0 0.0
          %302 = vmatprep.subr.mxu0 0.0
          %303 = vmatpush1.xpose.msra.mxu0 0.0
          %304 = vmatprep.subr.mxu0 0.0
          %305 = vmatpush1.xpose.msra.mxu0 0.0
          %306 = vmatprep.subr.mxu0 0.0
          %307 = vmatpush1.xpose.msra.mxu0 0.0
          %308 = vmatprep.subr.mxu0 0.0
          %309 = vmatpush1.xpose.msra.mxu0 0.0
          %310 = vmatprep.subr.mxu0 0.0
          %311 = vmatpush1.xpose.msra.mxu0 0.0
          %312 = vmatprep.subr.mxu0 0.0
          %313 = vmatpush1.xpose.msra.mxu0 0.0
          %314 = vmatprep.subr.mxu0 0.0
          %315 = vmatpush1.xpose.msra.mxu0 0.0
          %316 = vmatprep.subr.mxu0 0.0
          %317 = vmatpush1.xpose.msra.mxu0 0.0
          %318 = vmatprep.subr.mxu0 0.0
          %319 = vmatpush1.xpose.msra.mxu0 0.0
          %320 = vmatprep.subr.mxu0 0.0
          %321 = vmatpush1.xpose.msra.mxu0 0.0
          %322 = vmatprep.subr.mxu0 0.0
          %323 = vmatpush1.xpose.msra.mxu0 0.0
          %324 = vmatprep.subr.mxu0 0.0
          %325 = vmatpush1.xpose.msra.mxu0 0.0
          %326 = vmatprep.subr.mxu0 0.0
          %327 = vmatpush1.xpose.msra.mxu0 0.0
          %328 = vmatprep.subr.mxu0 0.0
          %329 = vmatpush1.xpose.msra.mxu0 0.0
          %330 = vmatprep.subr.mxu0 0.0
          %331 = vmatpush1.xpose.msra.mxu0 0.0
          %332 = vmatprep.subr.mxu0 0.0
          %333 = vmatpush1.xpose.msra.mxu0 0.0
          %334 = vmatprep.subr.mxu0 0.0
          %335 = vmatpush1.xpose.msra.mxu0 0.0
          %336 = vmatprep.subr.mxu0 0.0
          %337 = vmatpush1.xpose.msra.mxu0 0.0
          %338 = vmatprep.subr.mxu0 0.0
          %339 = vmatpush1.xpose.msra.mxu0 0.0
          %340 = vmatprep.subr.mxu0 0.0
          %341 = vmatpush1.xpose.msra.mxu0 0.0
          %342 = vmatprep.subr.mxu0 0.0
          %343 = vmatpush1.xpose.msra.mxu0 0.0
          %344 = vmatprep.subr.mxu0 0.0
          %345 = vmatpush1.xpose.msra.mxu0 0.0
          %346 = vmatprep.subr.mxu0 0.0
          %347 = vmatpush1.xpose.msra.mxu0 0.0
          %348 = vmatprep.subr.mxu0 0.0
          %349 = vmatpush1.xpose.msra.mxu0 0.0
          %350 = vmatprep.subr.mxu0 0.0
          %351 = vmatpush1.xpose.msra.mxu0 0.0
          %352 = vmatprep.subr.mxu0 0.0
          %353 = vmatpush1.xpose.msra.mxu0 0.0
          %354 = vmatprep.subr.mxu0 0.0
          %355 = vmatpush1.xpose.msra.mxu0 0.0
          %356 = vmatprep.subr.mxu0 0.0
          %357 = vmatpush1.xpose.msra.mxu0 0.0
          %358 = vmatprep.subr.mxu0 0.0
          %359 = vmatpush1.xpose.msra.mxu0 0.0
          %360 = vmatprep.subr.mxu0 0.0
          %361 = vmatpush1.xpose.msra.mxu0 0.0
          %362 = vmatprep.mubr.f32.mxu0 0.0
          %363 = vmatmul.mubr.f32.gmra.mrb[0].mxu0 %v293
          %v364 = vpop.f32.mrb[0].mxu0
          %v365 = vadd.f32 0.0, %v364
          %v366 = vpop.f32.mrb[0].mxu0
          %367 = vdwg.mxu0
          %v368 = vld [vmem:[#allocation2] sm:$0xff]
          %v369 = vsel %vm278, %v365, -inf
          %370 = vmax.xlane.f32.xlu0 %v369
          %v371 = vpop.xlane.xlu0 %370
          %v372 = vmax.f32 %v368, %v371
          %v373 = vsub.f32 %v368, %v372
          %v374 = vmul.f32 %v373, 1.442695
          %v375 = vpow.pop %v374
          %377 = vset.pattern.permute.xlu0 0
          %378 = vperm.xlu0 %377, %v372
          %v379 = vpop.permute.xlu0 %378
          %v381 = vsub.f32 %v365, %v379
          %v382 = vmul.f32 %v381, 1.442695
          %v383 = vpow.pop %v382
          %v384 = vld [vmem:[#allocation3] sm:$0xff]
          %v385 = vmul.f32 %v375, %v384
          %v386 = vsel %vm278, %v383, 0.0
          %387 = vadd.xlane.f32.xlu0 %v386
          %v388 = vpop.xlane.xlu0 %387
          %v389 = vadd.f32 %v385, %v388
          %390 = vst.msk [vmem:[#allocation3] sm:$0xff] %vm275, %v389
          %v391 = vld [vmem:[#allocation4] sm:$0xff]
          %393 = vset.pattern.permute.xlu0 0
          %394 = vperm.xlu0 %393, %v375
          %v395 = vpop.permute.xlu0 %394
          %v397 = vmul.f32 %v395, %v391
          %v399 = vsel %vm278, %v383, 0
          %401 = vmatprep.subr.mxu0 0.0
          %402 = vmatpush1.msra.mxu0 %v291
          %403 = vmatprep.subr.mxu0 0.0
          %404 = vmatpush1.msra.mxu0 0.0
          %405 = vmatprep.subr.mxu0 0.0
          %406 = vmatpush1.msra.mxu0 0.0
          %407 = vmatprep.subr.mxu0 0.0
          %408 = vmatpush1.msra.mxu0 0.0
          %409 = vmatprep.subr.mxu0 0.0
          %410 = vmatpush1.msra.mxu0 0.0
          %411 = vmatprep.subr.mxu0 0.0
          %412 = vmatpush1.msra.mxu0 0.0
          %413 = vmatprep.subr.mxu0 0.0
          %414 = vmatpush1.msra.mxu0 0.0
          %415 = vmatprep.subr.mxu0 0.0
          %416 = vmatpush1.msra.mxu0 0.0
          %417 = vmatprep.subr.mxu0 0.0
          %418 = vmatpush1.msra.mxu0 0.0
          %419 = vmatprep.subr.mxu0 0.0
          %420 = vmatpush1.msra.mxu0 0.0
          %421 = vmatprep.subr.mxu0 0.0
          %422 = vmatpush1.msra.mxu0 0.0
          %423 = vmatprep.subr.mxu0 0.0
          %424 = vmatpush1.msra.mxu0 0.0
          %425 = vmatprep.subr.mxu0 0.0
          %426 = vmatpush1.msra.mxu0 0.0
          %427 = vmatprep.subr.mxu0 0.0
          %428 = vmatpush1.msra.mxu0 0.0
          %429 = vmatprep.subr.mxu0 0.0
          %430 = vmatpush1.msra.mxu0 0.0
          %431 = vmatprep.subr.mxu0 0.0
          %432 = vmatpush1.msra.mxu0 0.0
          %433 = vmatprep.subr.mxu0 0.0
          %434 = vmatpush1.msra.mxu0 0.0
          %435 = vmatprep.subr.mxu0 0.0
          %436 = vmatpush1.msra.mxu0 0.0
          %437 = vmatprep.subr.mxu0 0.0
          %438 = vmatpush1.msra.mxu0 0.0
          %439 = vmatprep.subr.mxu0 0.0
          %440 = vmatpush1.msra.mxu0 0.0
          %441 = vmatprep.subr.mxu0 0.0
          %442 = vmatpush1.msra.mxu0 0.0
          %443 = vmatprep.subr.mxu0 0.0
          %444 = vmatpush1.msra.mxu0 0.0
          %445 = vmatprep.subr.mxu0 0.0
          %446 = vmatpush1.msra.mxu0 0.0
          %447 = vmatprep.subr.mxu0 0.0
          %448 = vmatpush1.msra.mxu0 0.0
          %449 = vmatprep.subr.mxu0 0.0
          %450 = vmatpush1.msra.mxu0 0.0
          %451 = vmatprep.subr.mxu0 0.0
          %452 = vmatpush1.msra.mxu0 0.0
          %453 = vmatprep.subr.mxu0 0.0
          %454 = vmatpush1.msra.mxu0 0.0
          %455 = vmatprep.subr.mxu0 0.0
          %456 = vmatpush1.msra.mxu0 0.0
          %457 = vmatprep.subr.mxu0 0.0
          %458 = vmatpush1.msra.mxu0 0.0
          %459 = vmatprep.subr.mxu0 0.0
          %460 = vmatpush1.msra.mxu0 0.0
          %461 = vmatprep.subr.mxu0 0.0
          %462 = vmatpush1.msra.mxu0 0.0
          %463 = vmatprep.subr.mxu0 0.0
          %464 = vmatpush1.msra.mxu0 0.0
          %465 = vmatprep.mubr.f32.mxu0 0.0
          %466 = vmatmul.mubr.f32.gmra.mrb[0].mxu0 %v399
          %v467 = vpop.f32.mrb[0].mxu0
          %v468 = vadd.f32 0.0, %v467
          %v469 = vpop.f32.mrb[0].mxu0
          %470 = vdwg.mxu0
          %v471 = vadd.f32 %v397, %v468
          %472 = vst.msk [vmem:[#allocation4] sm:$0xff] %vm278, %v471
          %473 = vst.msk [vmem:[#allocation2] sm:$0xff] %vm275, %v372
        $region49: #{causal_self_attention.4} parent=31 // loop_footer
          %s284 = sadd.s32 %s282, 1
        $region50: #{causal_self_attention.4} parent=31 // loop_footer_branch
          %281 = sbr.rel target = $region46
        $region51: #{causal_self_attention.4} parent=31 // loop_exit
          _
        %v474 = vlaneseq
        %v475 = vshrl.u32 %v474, 7
        %v476 = vlaneseq
        %v477 = vand.u32 %v476, 127
        %s478 = scalar_lea.vmem %s232, %s274 [#allocation8]
        %v479 = vld [vmem:[%s478] sm:$0xff]
        %s480 = scalar_lea.vmem %s241, %s274 [#allocation10]
        %v481 = vld [vmem:[%s480] sm:$0xff]
        %vm482 = vcmp.ge.s32.totalorder %v475, %v477
        %v484 = vsel %vm278, %v280, 0
        %v487 = vsel %vm278, %v479, 0
        %489 = vmatprep.subr.mxu0 0.0
        %490 = vmatpush1.xpose.msra.mxu0 %v487
        %491 = vmatprep.subr.mxu0 0.0
        %492 = vmatpush1.xpose.msra.mxu0 0.0
        %493 = vmatprep.subr.mxu0 0.0
        %494 = vmatpush1.xpose.msra.mxu0 0.0
        %495 = vmatprep.subr.mxu0 0.0
        %496 = vmatpush1.xpose.msra.mxu0 0.0
        %497 = vmatprep.subr.mxu0 0.0
        %498 = vmatpush1.xpose.msra.mxu0 0.0
        %499 = vmatprep.subr.mxu0 0.0
        %500 = vmatpush1.xpose.msra.mxu0 0.0
        %501 = vmatprep.subr.mxu0 0.0
        %502 = vmatpush1.xpose.msra.mxu0 0.0
        %503 = vmatprep.subr.mxu0 0.0
        %504 = vmatpush1.xpose.msra.mxu0 0.0
        %505 = vmatprep.subr.mxu0 0.0
        %506 = vmatpush1.xpose.msra.mxu0 0.0
        %507 = vmatprep.subr.mxu0 0.0
        %508 = vmatpush1.xpose.msra.mxu0 0.0
        %509 = vmatprep.subr.mxu0 0.0
        %510 = vmatpush1.xpose.msra.mxu0 0.0
        %511 = vmatprep.subr.mxu0 0.0
        %512 = vmatpush1.xpose.msra.mxu0 0.0
        %513 = vmatprep.subr.mxu0 0.0
        %514 = vmatpush1.xpose.msra.mxu0 0.0
        %515 = vmatprep.subr.mxu0 0.0
        %516 = vmatpush1.xpose.msra.mxu0 0.0
        %517 = vmatprep.subr.mxu0 0.0
        %518 = vmatpush1.xpose.msra.mxu0 0.0
        %519 = vmatprep.subr.mxu0 0.0
        %520 = vmatpush1.xpose.msra.mxu0 0.0
        %521 = vmatprep.subr.mxu0 0.0
        %522 = vmatpush1.xpose.msra.mxu0 0.0
        %523 = vmatprep.subr.mxu0 0.0
        %524 = vmatpush1.xpose.msra.mxu0 0.0
        %525 = vmatprep.subr.mxu0 0.0
        %526 = vmatpush1.xpose.msra.mxu0 0.0
        %527 = vmatprep.subr.mxu0 0.0
        %528 = vmatpush1.xpose.msra.mxu0 0.0
        %529 = vmatprep.subr.mxu0 0.0
        %530 = vmatpush1.xpose.msra.mxu0 0.0
        %531 = vmatprep.subr.mxu0 0.0
        %532 = vmatpush1.xpose.msra.mxu0 0.0
        %533 = vmatprep.subr.mxu0 0.0
        %534 = vmatpush1.xpose.msra.mxu0 0.0
        %535 = vmatprep.subr.mxu0 0.0
        %536 = vmatpush1.xpose.msra.mxu0 0.0
        %537 = vmatprep.subr.mxu0 0.0
        %538 = vmatpush1.xpose.msra.mxu0 0.0
        %539 = vmatprep.subr.mxu0 0.0
        %540 = vmatpush1.xpose.msra.mxu0 0.0
        %541 = vmatprep.subr.mxu0 0.0
        %542 = vmatpush1.xpose.msra.mxu0 0.0
        %543 = vmatprep.subr.mxu0 0.0
        %544 = vmatpush1.xpose.msra.mxu0 0.0
        %545 = vmatprep.subr.mxu0 0.0
        %546 = vmatpush1.xpose.msra.mxu0 0.0
        %547 = vmatprep.subr.mxu0 0.0
        %548 = vmatpush1.xpose.msra.mxu0 0.0
        %549 = vmatprep.subr.mxu0 0.0
        %550 = vmatpush1.xpose.msra.mxu0 0.0
        %551 = vmatprep.subr.mxu0 0.0
        %552 = vmatpush1.xpose.msra.mxu0 0.0
        %553 = vmatprep.mubr.f32.mxu0 0.0
        %554 = vmatmul.mubr.f32.gmra.mrb[0].mxu0 %v484
        %v555 = vpop.f32.mrb[0].mxu0
        %v556 = vadd.f32 0.0, %v555
        %v557 = vpop.f32.mrb[0].mxu0
        %558 = vdwg.mxu0
        %v559 = vsel %vm482, %v556, -inf
        %v560 = vld [vmem:[#allocation2] sm:$0xff]
        %v561 = vsel %vm278, %v559, -inf
        %562 = vmax.xlane.f32.xlu0 %v561
        %v563 = vpop.xlane.xlu0 %562
        %v564 = vmax.f32 %v560, %v563
        %v565 = vsub.f32 %v560, %v564
        %v566 = vmul.f32 %v565, 1.442695
        %v567 = vpow.pop %v566
        %569 = vset.pattern.permute.xlu0 0
        %570 = vperm.xlu0 %569, %v564
        %v571 = vpop.permute.xlu0 %570
        %v573 = vsub.f32 %v559, %v571
        %v574 = vmul.f32 %v573, 1.442695
        %v575 = vpow.pop %v574
        %v576 = vld [vmem:[#allocation3] sm:$0xff]
        %v577 = vmul.f32 %v567, %v576
        %v578 = vsel %vm278, %v575, 0.0
        %579 = vadd.xlane.f32.xlu0 %v578
        %v580 = vpop.xlane.xlu0 %579
        %v581 = vadd.f32 %v577, %v580
        %582 = vst.msk [vmem:[#allocation3] sm:$0xff] %vm275, %v581
        %v583 = vld [vmem:[#allocation4] sm:$0xff]
        %585 = vset.pattern.permute.xlu0 0
        %586 = vperm.xlu0 %585, %v567
        %v587 = vpop.permute.xlu0 %586
        %v589 = vmul.f32 %v587, %v583
        %v591 = vsel %vm278, %v575, 0
        %593 = vmatprep.subr.mxu0 0.0
        %594 = vmatpush1.msra.mxu0 %v481
        %595 = vmatprep.subr.mxu0 0.0
        %596 = vmatpush1.msra.mxu0 0.0
        %597 = vmatprep.subr.mxu0 0.0
        %598 = vmatpush1.msra.mxu0 0.0
        %599 = vmatprep.subr.mxu0 0.0
        %600 = vmatpush1.msra.mxu0 0.0
        %601 = vmatprep.subr.mxu0 0.0
        %602 = vmatpush1.msra.mxu0 0.0
        %603 = vmatprep.subr.mxu0 0.0
        %604 = vmatpush1.msra.mxu0 0.0
        %605 = vmatprep.subr.mxu0 0.0
        %606 = vmatpush1.msra.mxu0 0.0
        %607 = vmatprep.subr.mxu0 0.0
        %608 = vmatpush1.msra.mxu0 0.0
        %609 = vmatprep.subr.mxu0 0.0
        %610 = vmatpush1.msra.mxu0 0.0
        %611 = vmatprep.subr.mxu0 0.0
        %612 = vmatpush1.msra.mxu0 0.0
        %613 = vmatprep.subr.mxu0 0.0
        %614 = vmatpush1.msra.mxu0 0.0
        %615 = vmatprep.subr.mxu0 0.0
        %616 = vmatpush1.msra.mxu0 0.0
        %617 = vmatprep.subr.mxu0 0.0
        %618 = vmatpush1.msra.mxu0 0.0
        %619 = vmatprep.subr.mxu0 0.0
        %620 = vmatpush1.msra.mxu0 0.0
        %621 = vmatprep.subr.mxu0 0.0
        %622 = vmatpush1.msra.mxu0 0.0
        %623 = vmatprep.subr.mxu0 0.0
        %624 = vmatpush1.msra.mxu0 0.0
        %625 = vmatprep.subr.mxu0 0.0
        %626 = vmatpush1.msra.mxu0 0.0
        %627 = vmatprep.subr.mxu0 0.0
        %628 = vmatpush1.msra.mxu0 0.0
        %629 = vmatprep.subr.mxu0 0.0
        %630 = vmatpush1.msra.mxu0 0.0
        %631 = vmatprep.subr.mxu0 0.0
        %632 = vmatpush1.msra.mxu0 0.0
        %633 = vmatprep.subr.mxu0 0.0
        %634 = vmatpush1.msra.mxu0 0.0
        %635 = vmatprep.subr.mxu0 0.0
        %636 = vmatpush1.msra.mxu0 0.0
        %637 = vmatprep.subr.mxu0 0.0
        %638 = vmatpush1.msra.mxu0 0.0
        %639 = vmatprep.subr.mxu0 0.0
        %640 = vmatpush1.msra.mxu0 0.0
        %641 = vmatprep.subr.mxu0 0.0
        %642 = vmatpush1.msra.mxu0 0.0
        %643 = vmatprep.subr.mxu0 0.0
        %644 = vmatpush1.msra.mxu0 0.0
        %645 = vmatprep.subr.mxu0 0.0
        %646 = vmatpush1.msra.mxu0 0.0
        %647 = vmatprep.subr.mxu0 0.0
        %648 = vmatpush1.msra.mxu0 0.0
        %649 = vmatprep.subr.mxu0 0.0
        %650 = vmatpush1.msra.mxu0 0.0
        %651 = vmatprep.subr.mxu0 0.0
        %652 = vmatpush1.msra.mxu0 0.0
        %653 = vmatprep.subr.mxu0 0.0
        %654 = vmatpush1.msra.mxu0 0.0
        %655 = vmatprep.subr.mxu0 0.0
        %656 = vmatpush1.msra.mxu0 0.0
        %657 = vmatprep.mubr.f32.mxu0 0.0
        %658 = vmatmul.mubr.f32.gmra.mrb[0].mxu0 %v591
        %v659 = vpop.f32.mrb[0].mxu0
        %v660 = vadd.f32 0.0, %v659
        %v661 = vpop.f32.mrb[0].mxu0
        %662 = vdwg.mxu0
        %v663 = vadd.f32 %v589, %v660
        %664 = vst.msk [vmem:[#allocation4] sm:$0xff] %vm278, %v663
        %665 = vst.msk [vmem:[#allocation2] sm:$0xff] %vm275, %v564
        %v666 = vld [vmem:[#allocation3] sm:$0xff]
        %v667 = vrcp.pop %v666
        %v668 = vld [vmem:[#allocation4] sm:$0xff]
        %670 = vset.pattern.permute.xlu0 0
        %671 = vperm.xlu0 %670, %v667
        %v672 = vpop.permute.xlu0 %671
        %v674 = vmul.f32 %v668, %v672
        %675 = vst.msk [vmem:[%s273] sm:$0xff] %vm278, %v674
        %s676 = sand.u32 %s125, 1
        %s677 = scalar_lea.sflag [#allocation7], %s676
        %s678 = sand.u32 %s125, 1
        %s679 = smul.addr %s678, 8
        %s680 = scalar_lea.vmem [#allocation11], %s679
        // Predicated region
        $region52: #{causal_self_attention.4} parent=31 // pred_check
          %p681 = pneg %p135
        $region53: #{causal_self_attention.4} parent=31 // pred_check_branch
          %683 = sbr.rel (%p681) target = $region55
        $region54: #{causal_self_attention.4} parent=31 // pred_region
          %s685 = ssub.s32 128, 128
          %686 = vsyncadd %s677, %s685
          %s687 = sadd.s32 %s28, %s27
          %s688 = smul.addr %s687, 128
          %s689 = scalar_lea.hbm %s3, %s688
          %s691 = sshll.u32 %s680, 4
          %s692 = int_to_ptr.vmem [resolvable:$true] %s691
          %694 = dma.vmem_to_hbm [thread:$0]  %s692, 128, %s689, %s677
        $region55: #{causal_self_attention.4} parent=31 // pred_fallthru
          _
      $region32: #{causal_self_attention.4} parent=5 // pred_fallthru
        _
      %p695 = scmp.le.s32.totalorder 2, %s18
      // Predicated region
      $region56: #{causal_self_attention.4} parent=5 // pred_check
        %p696 = pneg %p695
      $region57: #{causal_self_attention.4} parent=5 // pred_check_branch
        %698 = sbr.rel (%p696) target = $region59
      $region58: #{causal_self_attention.4} parent=5 // pred_region
        %s699 = ssub.s32 %s18, 2
        // Predicated region
        $region60: #{causal_self_attention.4} parent=58 // pred_check
          %p700 = pneg %p141
        $region61: #{causal_self_attention.4} parent=58 // pred_check_branch
          %702 = sbr.rel (%p700) target = $region63
        $region62: #{causal_self_attention.4} parent=58 // pred_region
          %s703 = sand.u32 %s126, 1
          %s704 = scalar_lea.sflag [#allocation7], %s703
          %s705 = sand.u32 %s126, 1
          %s706 = smul.addr %s705, 8
          %s707 = scalar_lea.vmem [#allocation11], %s706
          %708 = dma.done %s704, 128
        $region63: #{causal_self_attention.4} parent=58 // pred_fallthru
          _
      $region59: #{causal_self_attention.4} parent=5 // pred_fallthru
        _
    $region6: #{causal_self_attention.4} parent=1 // loop_footer
      %s22 = sadd.s32 1, %s18
    $region7: #{causal_self_attention.4} parent=1 // loop_footer_branch
      %17 = sbr.rel target = $region3
    $region8: #{causal_self_attention.4} parent=1 // loop_exit
      _
    %709 = vsyncpa [#allocation6], 1
    %s710 = scalar_lea.sflag [#allocation6], 1
    %711 = vsyncpa %s710, 1
    %712 = vsyncpa [#allocation9], 1
    %s713 = scalar_lea.sflag [#allocation9], 1
    %714 = vsyncpa %s713, 1
    %715 = vsyncpa [#allocation7], 1
    %s716 = scalar_lea.sflag [#allocation7], 1
    %717 = vsyncpa %s716, 1

// kernel: causal_self_attention.5
$region0: #{causal_self_attention.5}
  #allocation0 [shape = 'u32[]', space=smem, size = 0x4, offset = 0x4, fixed_abs, tag = 'smem constant byte address 0x4 - core index']
  #allocation1 [shape = 'u32[144,128]{1,0:T(1,128)}', space=vmem, size = 0x12000, scoped, tag = 'internal scratch']
  #allocation2 [shape = 'f32[16,32]{1,0:T(8,128)}', space=vmem, size = 0x2000, scoped, tag = 'scratch operand']
  %s0 = inlined_call_operand.hbm [shape: bf16[16,32], index: 0, kind: input, shape index: {}]
  %s1 = inlined_call_operand.hbm [shape: bf16[32,32], index: 1, kind: input, shape index: {}]
  %s2 = inlined_call_operand.hbm [shape: f32[16,32], index: 2, kind: output, shape index: {}]
  %s3 = sld [smem:[#allocation0]]
  $region34: #{causal_self_attention.5} parent=0
    _
  %s5 = ssub.s32 1, %s3
  %s6 = scalar_select 0, %s5, %s3
  $region1: #{causal_self_attention.5} parent=0
    #allocation3 [shape = 'u8[4096]{0}', space=vmem, size = 0x1000, scoped, tag = 'input window, operand 0, single buffered']
    #allocation4 [shape = 's32[1]{0}', space=sflag, size = 0x4, scoped, tag = 'scoped memory for causal_self_attention.5']
    #allocation5 [shape = 's32[1]{0}', space=sflag, size = 0x4, scoped, tag = 'scoped memory for causal_self_attention.5']
    #allocation6 [shape = 'u8[8192]{0}', space=vmem, size = 0x2000, scoped, tag = 'input window, operand 1, single buffered']
    #allocation7 [shape = 's32[1]{0}', space=sflag, size = 0x4, scoped, tag = 'scoped memory for causal_self_attention.5']
    #allocation8 [shape = 'u8[8192]{0}', space=vmem, size = 0x2000, scoped, tag = 'output window, operand 0, single buffered']
    %7 = vsyncpa [#allocation4], 0
    %8 = vsyncpa [#allocation7], 0
    %9 = vsyncpa [#allocation5], 0
    // Predicated region
    $region2: #{causal_self_attention.5} parent=1 // pred_check
      _
    $region3: #{causal_self_attention.5} parent=1 // pred_check_branch
      %11 = sbr.rel (0) target = $region5
    $region4: #{causal_self_attention.5} parent=1 // pred_region
      %s13 = ssub.s32 128, 128
      %14 = vsyncadd [#allocation4], %s13
      %s15 = sshll.u32 [#allocation3], 4
      %s16 = int_to_ptr.vmem [resolvable:$true] %s15
      %21 = dma.hbm_to_vmem [thread:$0]  %s0, 128, %s16, [#allocation4], 64, 64, 4
    $region5: #{causal_self_attention.5} parent=1 // pred_fallthru
      _
    // Predicated region
    $region6: #{causal_self_attention.5} parent=1 // pred_check
      _
    $region7: #{causal_self_attention.5} parent=1 // pred_check_branch
      %23 = sbr.rel (0) target = $region9
    $region8: #{causal_self_attention.5} parent=1 // pred_region
      %s25 = ssub.s32 256, 256
      %26 = vsyncadd [#allocation7], %s25
      %s27 = sshll.u32 [#allocation6], 4
      %s28 = int_to_ptr.vmem [resolvable:$true] %s27
      %33 = dma.hbm_to_vmem [thread:$0]  %s1, 256, %s28, [#allocation7], 64, 64, 4
    $region9: #{causal_self_attention.5} parent=1 // pred_fallthru
      _
    // Predicated region
    $region10: #{causal_self_attention.5} parent=1 // pred_check
      _
    $region11: #{causal_self_attention.5} parent=1 // pred_check_branch
      %35 = sbr.rel (0) target = $region13
    $region12: #{causal_self_attention.5} parent=1 // pred_region
      %36 = dma.done [#allocation4], 128
    $region13: #{causal_self_attention.5} parent=1 // pred_fallthru
      _
    // Predicated region
    $region14: #{causal_self_attention.5} parent=1 // pred_check
      _
    $region15: #{causal_self_attention.5} parent=1 // pred_check_branch
      %38 = sbr.rel (0) target = $region17
    $region16: #{causal_self_attention.5} parent=1 // pred_region
      %39 = dma.done [#allocation7], 256
    $region17: #{causal_self_attention.5} parent=1 // pred_fallthru
      _
    %p41 = scmp.eq.s32.totalorder 0, 0
    // Predicated region
    $region18: #{causal_self_attention.5} parent=1 // pred_check
      %p42 = pneg %p41
    $region19: #{causal_self_attention.5} parent=1 // pred_check_branch
      %44 = sbr.rel (%p42) target = $region21
    $region20: #{causal_self_attention.5} parent=1 // pred_region
      %vm45 = vcmask 261120
      %46 = vst.msk [vmem:[#allocation2] sm:$0xff] %vm45, 0.0
      %47 = vst.msk [vmem:[#allocation2 + $0x8] sm:$0xff] %vm45, 0.0
    $region21: #{causal_self_attention.5} parent=1 // pred_fallthru
      _
    %v48 = vld [vmem:[#allocation2] sm:$0xff]
    %v49 = vld [vmem:[#allocation2 + $0x8] sm:$0xff]
    %v50 = vld [vmem:[#allocation3] sm:$0xf]
    %v51 = vld [vmem:[#allocation3 + $0x4] sm:$0xf]
    %v52 = vld [vmem:[#allocation6] sm:$0xf]
    %v53 = vld [vmem:[#allocation6 + $0x4] sm:$0xf]
    %v54 = vld [vmem:[#allocation6 + $0x8] sm:$0xf]
    %v55 = vld [vmem:[#allocation6 + $0xc] sm:$0xf]
    %v58 = vunpack.c.l.b16 %v50
    %v59 = vunpack.c.l.b16 %v51
    %v60 = vpack.c.b16 %v59, %v58
    %v65 = vunpack.c.l.b16 %v52
    %v66 = vunpack.c.l.b16 %v53
    %v67 = vunpack.c.l.b16 %v54
    %v68 = vunpack.c.l.b16 %v55
    %v69 = vpack.c.b16 %v66, %v65
    %v70 = vpack.c.b16 %v68, %v67
    %vm73 = vcmask 261120
    %v75 = vsel %vm73, %v60, 0
    %77 = vmatprep.subr.bf16.mxu0 0
    %78 = vmatpush1.bf16.msra.mxu0 %v69
    %79 = vmatprep.subr.bf16.mxu0 0
    %80 = vmatpush1.bf16.msra.mxu0 %v70
    %81 = vmatprep.subr.bf16.mxu0 0
    %82 = vmatpush1.bf16.msra.mxu0 0
    %83 = vmatprep.subr.bf16.mxu0 0
    %84 = vmatpush1.bf16.msra.mxu0 0
    %85 = vmatprep.subr.bf16.mxu0 0
    %86 = vmatpush1.bf16.msra.mxu0 0
    %87 = vmatprep.subr.bf16.mxu0 0
    %88 = vmatpush1.bf16.msra.mxu0 0
    %89 = vmatprep.subr.bf16.mxu0 0
    %90 = vmatpush1.bf16.msra.mxu0 0
    %91 = vmatprep.subr.bf16.mxu0 0
    %92 = vmatpush1.bf16.msra.mxu0 0
    %93 = vmatprep.subr.bf16.mxu0 0
    %94 = vmatpush1.bf16.msra.mxu0 0
    %95 = vmatprep.subr.bf16.mxu0 0
    %96 = vmatpush1.bf16.msra.mxu0 0
    %97 = vmatprep.subr.bf16.mxu0 0
    %98 = vmatpush1.bf16.msra.mxu0 0
    %99 = vmatprep.subr.bf16.mxu0 0
    %100 = vmatpush1.bf16.msra.mxu0 0
    %101 = vmatprep.subr.bf16.mxu0 0
    %102 = vmatpush1.bf16.msra.mxu0 0
    %103 = vmatprep.subr.bf16.mxu0 0
    %104 = vmatpush1.bf16.msra.mxu0 0
    %105 = vmatprep.subr.bf16.mxu0 0
    %106 = vmatpush1.bf16.msra.mxu0 0
    %107 = vmatprep.subr.bf16.mxu0 0
    %108 = vmatpush1.bf16.msra.mxu0 0
    %109 = vmatprep.mubr.bf16.mxu0 0
    %110 = vmatmul.mubr.bf16.gmra.mrb[0].mxu0 %v75
    %v111 = vpop.f32.mrb[0].mxu0
    %v112 = vadd.f32 0.0, %v111
    %v113 = vpop.f32.mrb[0].mxu0
    %v114 = vpop.f32.mrb[0].mxu0
    %v115 = vadd.f32 0.0, %v114
    %v116 = vpop.f32.mrb[0].mxu0
    %117 = vdwg.mxu0
    %v118 = vadd.f32 %v48, %v112
    %v119 = vadd.f32 %v49, %v115
    %120 = vst.msk [vmem:[#allocation2] sm:$0xff] %vm73, %v118
    %121 = vst.msk [vmem:[#allocation2 + $0x8] sm:$0xff] %vm73, %v119
    // Predicated region
    $region22: #{causal_self_attention.5} parent=1 // pred_check
      %p122 = pneg %p41
    $region23: #{causal_self_attention.5} parent=1 // pred_check_branch
      %124 = sbr.rel (%p122) target = $region25
    $region24: #{causal_self_attention.5} parent=1 // pred_region
      %v125 = vld [vmem:[#allocation2] sm:$0xff]
      %v126 = vld [vmem:[#allocation2 + $0x8] sm:$0xff]
      %127 = vst.msk [vmem:[#allocation8] sm:$0xff] %vm73, %v125
      %128 = vst.msk [vmem:[#allocation8 + $0x8] sm:$0xff] %vm73, %v126
    $region25: #{causal_self_attention.5} parent=1 // pred_fallthru
      _
    // Predicated region
    $region26: #{causal_self_attention.5} parent=1 // pred_check
      _
    $region27: #{causal_self_attention.5} parent=1 // pred_check_branch
      %130 = sbr.rel (0) target = $region29
    $region28: #{causal_self_attention.5} parent=1 // pred_region
      %s132 = ssub.s32 256, 256
      %133 = vsyncadd [#allocation5], %s132
      %s134 = sshll.u32 [#allocation8], 4
      %s135 = int_to_ptr.vmem [resolvable:$true] %s134
      %140 = dma.vmem_to_hbm [thread:$0]  %s135, 256, %s2, [#allocation5], 128, 128, 8
    $region29: #{causal_self_attention.5} parent=1 // pred_fallthru
      _
    // Predicated region
    $region30: #{causal_self_attention.5} parent=1 // pred_check
      _
    $region31: #{causal_self_attention.5} parent=1 // pred_check_branch
      %142 = sbr.rel (0) target = $region33
    $region32: #{causal_self_attention.5} parent=1 // pred_region
      %143 = dma.done [#allocation5], 256
    $region33: #{causal_self_attention.5} parent=1 // pred_fallthru
      _
    %144 = vsyncpa [#allocation4], 1
    %145 = vsyncpa [#allocation7], 1
    %146 = vsyncpa [#allocation5], 1

</llo_original>
